<compile_context>
chip_gen: v5e
topology: v5e:2x2
jax: 0.10.0
libtpu: 0.0.40
codegen_flags: <defaults>
</compile_context>

<pallas_src>
import math
import numpy as np

import jax
import jax.numpy as jnp
from jax import lax
from jax.experimental import pallas as pl
from jax.experimental.pallas import tpu as pltpu


# ----------------------------------------------------------------------------
# Pallas kernel: one episode per grid step.
#   label_ref    (N, D)     caller dtype   label_reps of episode b
#   wmlpT_ref    (D, D)     bf16           mlp_linear.weight.T (VMEM-resident)
#   bmlp_ref     (1, D)     f32            mlp_linear.bias
#   w12_ref      (D, 8)     bf16           col0 = w1*inv, col1 = w2*inv
#   srcbias_ref  (N+1, 128) f32            rows 0..N-1: packed source trans
#                                          (lanes 0..N-1 trans, N start, N+1 end),
#                                          row N: bias row
#                                          (b*inv | (s.w1+b)*inv | (e.w2+b)*inv | -1e30)
#   out_ref      (N, 128)   f32            packed (trans | start | end | 0)
# ----------------------------------------------------------------------------
def _transition_kernel(label_ref, wmlpT_ref, bmlp_ref, w12_ref, srcbias_ref,
                       out_ref):
    N = out_ref.shape[0]          # no-pad tag count (9)
    L = out_ref.shape[1]          # packed lane width (128)

    # MLP: h = tanh(label_reps @ W_mlp^T + b_mlp).  bf16 MXU inputs, f32 accum,
    # f32 epilogue.
    x = label_ref[...].astype(jnp.bfloat16)
    h = jnp.tanh(
        jnp.dot(x, wmlpT_ref[...], preferred_element_type=jnp.float32)
        + bmlp_ref[...])                                          # (N, D) f32

    # Fused tiny projection: one (N,D)x(D,8) bf16 matmul gives h.w1*inv and
    # h.w2*inv as columns 0 / 1.
    r = jnp.dot(h.astype(jnp.bfloat16), w12_ref[...],
                preferred_element_type=jnp.float32)               # (N, 8) f32
    a_col = r[:, 0:1]                                             # (N, 1)
    c_col = r[:, 1:2]                                             # (N, 1)

    # Lane-indexed copy of c (== transpose of c_col, done as select + sublane
    # reduce -> VPU/XLU only, no relayout or extra MXU pass).
    row = lax.broadcasted_iota(jnp.int32, (N, L), 0)
    lane = lax.broadcasted_iota(jnp.int32, (N, L), 1)
    c_row = jnp.sum(jnp.where(row == lane, c_col, 0.0),
                    axis=0, keepdims=True)                        # (1, L)

    # Packed label score:
    #   lane j < N : a[i] + c[j] + b*inv                     (trans)
    #   lane N     : c[i] + (start.w1 + b)*inv               (start)
    #   lane N+1   : a[i] + (end.w2  + b)*inv                (end)
    #   lane >=N+2 : -1e30 bias -> relu -> 0                 (padding)
    sb = srcbias_ref[...]                                         # (N+1, L)
    col_part = jnp.where(lane == N, c_col, a_col)                 # (N, L)
    label_packed = col_part + c_row + sb[N:N + 1, :]

    # r == 1 branch of the module: source + g(label), g = relu.
    out_ref[...] = sb[0:N, :] + jnp.maximum(label_packed, 0.0)


# ----------------------------------------------------------------------------
# One-time parameter preparation (call ONCE, outside the per-call path).
# ----------------------------------------------------------------------------
def prepare_params(w_mlp, b_mlp, w_cat, b_cat, start_reps, end_reps,
                   no_pad_num_tags, lane_width=128):
    D = w_mlp.shape[0]
    N, L = no_pad_num_tags, lane_width
    inv = 1.0 / (2.0 * math.sqrt(D))

    w1 = w_cat[0, :D].astype(jnp.float32)
    w2 = w_cat[0, D:].astype(jnp.float32)
    w12 = (jnp.zeros((D, 8), jnp.float32)
           .at[:, 0].set(w1 * inv).at[:, 1].set(w2 * inv))        # pre-scaled

    b = b_cat.reshape(()).astype(jnp.float32)
    s_dot = jnp.dot(start_reps.astype(jnp.float32), w1)           # h-independent
    e_dot = jnp.dot(end_reps.astype(jnp.float32), w2)             # h-independent

    lane = jnp.arange(L)
    bias_row = jnp.where(
        lane < N, b * inv,
        jnp.where(lane == N, (s_dot + b) * inv,
                  jnp.where(lane == N + 1, (e_dot + b) * inv, -1e30)))
    return {
        "wmlpT": w_mlp.T.astype(jnp.bfloat16),                    # (D, D) bf16
        "bmlp": b_mlp.reshape(1, D).astype(jnp.float32),          # (1, D)
        "w12": w12.astype(jnp.bfloat16),                          # (D, 8) bf16
        "bias_row": bias_row.reshape(1, L).astype(jnp.float32),   # (1, 128)
    }


# ----------------------------------------------------------------------------
# Per-call wrapper.  label_reps: (B, N, D) for B episodes (or (N, D) for one).
# Returns (trans (B,N,N), start (B,N), end (B,N)); batch dim squeezed for 2-D in.
# ----------------------------------------------------------------------------
@jax.jit
def few_shot_transition_scorer(params, label_reps, src_trans, src_start, src_end):
    squeeze = label_reps.ndim == 2
    lr = label_reps[None] if squeeze else label_reps
    B, N, D = lr.shape
    L = params["bias_row"].shape[1]
    assert N + 2 <= L

    # Pack the tiny source transitions + bias row into one lane-dense slab.
    src_packed = jnp.zeros((N, L), jnp.float32)
    src_packed = src_packed.at[:, :N].set(src_trans.astype(jnp.float32))
    src_packed = src_packed.at[:, N].set(src_start.astype(jnp.float32))
    src_packed = src_packed.at[:, N + 1].set(src_end.astype(jnp.float32))
    srcbias = jnp.concatenate([src_packed, params["bias_row"]], axis=0)  # (N+1,L)

    flops = B * (2 * N * D * D + 2 * N * D * 8 + 6 * N * L)
    transcendentals = B * N * D
    bytes_accessed = (D * D * 2 + D * 4 + D * 8 * 2 + (N + 1) * L * 4
                      + B * (N * D * lr.dtype.itemsize + N * L * 4))

    out = pl.pallas_call(
        _transition_kernel,
        out_shape=jax.ShapeDtypeStruct((B, N, L), jnp.float32),
        grid=(B,),
        in_specs=[
            pl.BlockSpec((None, N, D), lambda b: (b, 0, 0)),   # per-episode labels
            pl.BlockSpec((D, D), lambda b: (0, 0)),            # W_mlp^T (resident)
            pl.BlockSpec((1, D), lambda b: (0, 0)),            # b_mlp   (resident)
            pl.BlockSpec((D, 8), lambda b: (0, 0)),            # w1/w2   (resident)
            pl.BlockSpec((N + 1, L), lambda b: (0, 0)),        # packed src + bias
        ],
        out_specs=pl.BlockSpec((None, N, L), lambda b: (b, 0, 0)),
        compiler_params=pltpu.CompilerParams(
            dimension_semantics=("parallel",)),
        cost_estimate=pl.CostEstimate(flops=flops,
                                      transcendentals=transcendentals,
                                      bytes_accessed=bytes_accessed),
    )(lr, params["wmlpT"], params["bmlp"], params["w12"], srcbias)

    trans = out[:, :, :N]
    start = out[:, :, N]
    end = out[:, :, N + 1]
    if squeeze:
        return trans[0], start[0], end[0]
    return trans, start, end


# ----------------------------------------------------------------------------
# Host-side glue: backoff-transition unfold indices (tiny, plain NumPy).
# TODO(synk): the r<1 support-set transition counting (get_target_trans) is a
# host-side data-dependent loop with no useful Pallas equivalent; unused at r=1.
# ----------------------------------------------------------------------------
def build_unfold_index(n_no_pad):
    sp = n_no_pad // 2
    idx = np.zeros((n_no_pad, n_no_pad), dtype=np.int32)
    viewer = np.arange(15).reshape(3, 5)
    idx[0][0] = viewer[0, 0]
    for j in range(1, sp + 1):
        idx[0][2 * j - 1] = viewer[0, 1]
        idx[0][2 * j] = viewer[0, 2]
    for i in range(1, sp + 1):
        B, I = 2 * i - 1, 2 * i
        for j in range(1, sp + 1):
            Bo, Io = 2 * j - 1, 2 * j
            idx[B][Bo] = viewer[1, 3]
            idx[B][Io] = viewer[1, 4]
            idx[I][Bo] = viewer[2, 3]
            idx[I][Io] = viewer[2, 4]
        idx[B][0] = viewer[1, 0]
        idx[I][0] = viewer[2, 0]
        idx[B][B] = viewer[1, 1]
        idx[B][I] = viewer[1, 2]
        idx[I][B] = viewer[2, 1]
        idx[I][I] = viewer[2, 2]
    return idx


def build_start_end_unfold_index(n_no_pad):
    sp = n_no_pad // 2
    idx = np.zeros(n_no_pad, dtype=np.int32)
    for i in range(1, sp + 1):
        idx[2 * i - 1] = 1
        idx[2 * i] = 2
    return idx


if __name__ == "__main__":
    num_tags = 10                 # includes [PAD]
    N = num_tags - 1              # no_pad_num_tags = 9  (O + 4 * (B, I))
    D = 768                       # emb_dim fixed at 768 in the module
    B = 2                         # episodes amortizing the weight DMA

    key = jax.random.PRNGKey(0)
    ks = jax.random.split(key, 10)

    # inputs (test_reps / support_target are unused when r == 1)
    label_reps = jax.random.normal(ks[0], (B, N, D), jnp.float32)

    # deterministic parameter init (shapes match the torch module)
    w_mlp = jax.random.normal(ks[1], (D, D), jnp.float32) / math.sqrt(D)
    b_mlp = 0.01 * jax.random.normal(ks[2], (D,), jnp.float32)
    w_cat = jax.random.normal(ks[3], (1, 2 * D), jnp.float32) / math.sqrt(2 * D)
    b_cat = 0.01 * jax.random.normal(ks[4], (1,), jnp.float32)
    start_reps = jax.random.normal(ks[5], (D,), jnp.float32)
    end_reps = jax.random.normal(ks[6], (D,), jnp.float32)
    backoff_trans = jax.random.normal(ks[7], (3, 5), jnp.float32) * math.sqrt(2.0 / 8.0)
    backoff_start = 0.5 * jax.random.normal(ks[8], (3,), jnp.float32)
    backoff_end = 0.5 * jax.random.normal(ks[9], (3,), jnp.float32)

    # unfold backoff transition (host-side glue, 15-element gather)
    uidx = build_unfold_index(N)
    seidx = build_start_end_unfold_index(N)
    src_trans = backoff_trans.reshape(-1)[uidx]        # (N, N)
    src_start = backoff_start[seidx]                   # (N,)
    src_end = backoff_end[seidx]                       # (N,)

    # one-time parameter prep (cached across calls)
    params = prepare_params(w_mlp, b_mlp, w_cat, b_cat, start_reps, end_reps, N)

    trans, start_trans, end_trans = few_shot_transition_scorer(
        params, label_reps, src_trans, src_start, src_end)
    jax.block_until_ready((trans, start_trans, end_trans))

    # plain-JAX reference (weights/activations rounded to bf16 to match the
    # kernel's MXU inputs; accumulation and epilogue stay f32)
    w_mlp_r = w_mlp.astype(jnp.bfloat16).astype(jnp.float32)
    x_r = label_reps.astype(jnp.bfloat16).astype(jnp.float32)
    h = jnp.tanh(jnp.einsum('bnd,kd->bnk', x_r, w_mlp_r) + b_mlp)
    w1, w2 = w_cat[0, :D], w_cat[0, D:]
    inv = 1.0 / (2.0 * math.sqrt(D))
    a = jnp.einsum('bnd,d->bn', h, w1)
    c = jnp.einsum('bnd,d->bn', h, w2)
    lab_trans = (a[:, :, None] + c[:, None, :] + b_cat[0]) * inv
    lab_start = (start_reps @ w1 + c + b_cat[0]) * inv
    lab_end = (a + end_reps @ w2 + b_cat[0]) * inv
    ref_trans = src_trans[None] + jnp.maximum(lab_trans, 0.0)
    ref_start = src_start[None] + jnp.maximum(lab_start, 0.0)
    ref_end = src_end[None] + jnp.maximum(lab_end, 0.0)

    assert trans.shape == (B, N, N)
    assert start_trans.shape == (B, N) and end_trans.shape == (B, N)
    assert np.allclose(np.asarray(trans), np.asarray(ref_trans), atol=2e-2)
    assert np.allclose(np.asarray(start_trans), np.asarray(ref_start), atol=2e-2)
    assert np.allclose(np.asarray(end_trans), np.asarray(ref_end), atol=2e-2)

    print("KERNEL_OK")
</pallas_src>

<mosaic_0001>
module attributes {stable_mosaic.version = 11 : i64} {
  func.func @_transition_kernel(%arg0: i32, %arg1: memref<1x9x768xf32, #tpu.memory_space<vmem>>, %arg2: memref<768x768xbf16, #tpu.memory_space<vmem>>, %arg3: memref<1x768xf32, #tpu.memory_space<vmem>>, %arg4: memref<768x8xbf16, #tpu.memory_space<vmem>>, %arg5: memref<10x128xf32, #tpu.memory_space<vmem>>, %arg6: memref<1x9x128xf32, #tpu.memory_space<vmem>>) attributes {dimension_semantics = [#tpu.dimension_semantics<parallel>], iteration_bounds = array<i64: 2>, scalar_prefetch = 0 : i64, scratch_operands = 0 : i64, tpu.core_type = #tpu.core_type<tc>, window_params = [{transform_indices = @transform_0, window_bounds = array<i64: 1, 9, 768>}, {pipeline_mode = #tpu.pipeline_mode<synchronous>, transform_indices = @transform_1, window_bounds = array<i64: 768, 768>}, {pipeline_mode = #tpu.pipeline_mode<synchronous>, transform_indices = @transform_2, window_bounds = array<i64: 1, 768>}, {pipeline_mode = #tpu.pipeline_mode<synchronous>, transform_indices = @transform_3, window_bounds = array<i64: 768, 8>}, {pipeline_mode = #tpu.pipeline_mode<synchronous>, transform_indices = @transform_4, window_bounds = array<i64: 10, 128>}, {transform_indices = @transform_5, window_bounds = array<i64: 1, 9, 128>}]} {
    %c0 = arith.constant 0 : index
    %c0_0 = arith.constant 0 : index
    %c0_1 = arith.constant 0 : index
    %0 = vector.load %arg1[%c0, %c0_0, %c0_1] : memref<1x9x768xf32, #tpu.memory_space<vmem>>, vector<1x9x768xf32>
    %1 = vector.shape_cast %0 : vector<1x9x768xf32> to vector<9x768xf32>
    %2 = arith.truncf %1 : vector<9x768xf32> to vector<9x768xbf16>
    %c0_2 = arith.constant 0 : index
    %c0_3 = arith.constant 0 : index
    %3 = vector.load %arg2[%c0_2, %c0_3] : memref<768x768xbf16, #tpu.memory_space<vmem>>, vector<768x768xbf16>
    %cst = arith.constant dense<0.000000e+00> : vector<9x768xf32>
    %4 = tpu.matmul %2, %3, %cst {dimension_numbers = #tpu.dot_dimension_numbers<[1], [0], [0], [1], [0, 0, 1, 1], [], []>} : vector<9x768xbf16>, vector<768x768xbf16>, vector<9x768xf32> -> vector<9x768xf32>
    %c0_4 = arith.constant 0 : index
    %c0_5 = arith.constant 0 : index
    %5 = vector.load %arg3[%c0_4, %c0_5] : memref<1x768xf32, #tpu.memory_space<vmem>>, vector<1x768xf32>
    %6 = vector.broadcast %5 : vector<1x768xf32> to vector<9x768xf32>
    %7 = arith.addf %4, %6 : vector<9x768xf32>
    %8 = math.tanh %7 : vector<9x768xf32>
    %9 = arith.truncf %8 : vector<9x768xf32> to vector<9x768xbf16>
    %c0_6 = arith.constant 0 : index
    %c0_7 = arith.constant 0 : index
    %10 = vector.load %arg4[%c0_6, %c0_7] : memref<768x8xbf16, #tpu.memory_space<vmem>>, vector<768x8xbf16>
    %cst_8 = arith.constant dense<0.000000e+00> : vector<9x8xf32>
    %11 = tpu.matmul %9, %10, %cst_8 {dimension_numbers = #tpu.dot_dimension_numbers<[1], [0], [0], [1], [0, 0, 1, 1], [], []>} : vector<9x768xbf16>, vector<768x8xbf16>, vector<9x8xf32> -> vector<9x8xf32>
    %12 = vector.extract_strided_slice %11 {offsets = [0, 0], sizes = [9, 1], strides = [1, 1]} : vector<9x8xf32> to vector<9x1xf32>
    %13 = vector.extract_strided_slice %11 {offsets = [0, 1], sizes = [9, 1], strides = [1, 1]} : vector<9x8xf32> to vector<9x1xf32>
    %14 = tpu.iota {dimensions = array<i32: 0>} : vector<9x128xi32>
    %15 = tpu.iota {dimensions = array<i32: 1>} : vector<9x128xi32>
    %16 = arith.cmpi eq, %14, %15 : vector<9x128xi32>
    %cst_9 = arith.constant 0.000000e+00 : f32
    %17 = vector.shape_cast %13 : vector<9x1xf32> to vector<9x1xf32>
    %18 = vector.broadcast %17 : vector<9x1xf32> to vector<9x128xf32>
    %19 = vector.broadcast %cst_9 : f32 to vector<9x128xf32>
    %20 = arith.select %16, %18, %19 : vector<9x128xi1>, vector<9x128xf32>
    %cst_10 = arith.constant dense<0.000000e+00> : vector<128xf32>
    %21 = vector.multi_reduction <add>, %20, %cst_10 [0] : vector<9x128xf32> to vector<128xf32>
    %22 = vector.shape_cast %21 : vector<128xf32> to vector<1x128xf32>
    %c0_11 = arith.constant 0 : index
    %c0_12 = arith.constant 0 : index
    %23 = vector.load %arg5[%c0_11, %c0_12] : memref<10x128xf32, #tpu.memory_space<vmem>>, vector<10x128xf32>
    %c9_i32 = arith.constant 9 : i32
    %24 = vector.broadcast %c9_i32 : i32 to vector<9x128xi32>
    %25 = arith.cmpi eq, %15, %24 : vector<9x128xi32>
    %26 = vector.shape_cast %13 : vector<9x1xf32> to vector<9x1xf32>
    %27 = vector.broadcast %26 : vector<9x1xf32> to vector<9x128xf32>
    %28 = vector.shape_cast %12 : vector<9x1xf32> to vector<9x1xf32>
    %29 = vector.broadcast %28 : vector<9x1xf32> to vector<9x128xf32>
    %30 = arith.select %25, %27, %29 : vector<9x128xi1>, vector<9x128xf32>
    %31 = vector.broadcast %22 : vector<1x128xf32> to vector<9x128xf32>
    %32 = arith.addf %30, %31 : vector<9x128xf32>
    %33 = vector.extract_strided_slice %23 {offsets = [9, 0], sizes = [1, 128], strides = [1, 1]} : vector<10x128xf32> to vector<1x128xf32>
    %34 = vector.broadcast %33 : vector<1x128xf32> to vector<9x128xf32>
    %35 = arith.addf %32, %34 : vector<9x128xf32>
    %36 = vector.extract_strided_slice %23 {offsets = [0, 0], sizes = [9, 128], strides = [1, 1]} : vector<10x128xf32> to vector<9x128xf32>
    %cst_13 = arith.constant 0.000000e+00 : f32
    %37 = vector.broadcast %cst_13 : f32 to vector<9x128xf32>
    %38 = arith.maximumf %35, %37 : vector<9x128xf32>
    %39 = arith.addf %36, %38 : vector<9x128xf32>
    %c0_14 = arith.constant 0 : index
    %c0_15 = arith.constant 0 : index
    %c0_16 = arith.constant 0 : index
    %40 = vector.load %arg6[%c0_14, %c0_15, %c0_16] : memref<1x9x128xf32, #tpu.memory_space<vmem>>, vector<1x9x128xf32>
    %41 = vector.shape_cast %40 : vector<1x9x128xf32> to vector<9x128xf32>
    %42 = vector.shape_cast %39 : vector<9x128xf32> to vector<1x9x128xf32>
    tpu.vector_store %arg6[%c0_14, %c0_15, %c0_16], %42 {strides = array<i32>} : memref<1x9x128xf32, #tpu.memory_space<vmem>>, vector<1x9x128xf32>,
    return
  }
  func.func @transform_0(%arg0: i32) -> (i32, i32, i32) {
    %c0_i32 = arith.constant 0 : i32
    %c0_i32_0 = arith.constant 0 : i32
    %c0_i32_1 = arith.constant 0 : i32
    return %arg0, %c0_i32, %c0_i32_0 : i32, i32, i32
  }
  func.func @transform_1(%arg0: i32) -> (i32, i32) {
    %c0_i32 = arith.constant 0 : i32
    %c0_i32_0 = arith.constant 0 : i32
    %c0_i32_1 = arith.constant 0 : i32
    return %c0_i32, %c0_i32_0 : i32, i32
  }
  func.func @transform_2(%arg0: i32) -> (i32, i32) {
    %c0_i32 = arith.constant 0 : i32
    %c0_i32_0 = arith.constant 0 : i32
    %c0_i32_1 = arith.constant 0 : i32
    return %c0_i32, %c0_i32_0 : i32, i32
  }
  func.func @transform_3(%arg0: i32) -> (i32, i32) {
    %c0_i32 = arith.constant 0 : i32
    %c0_i32_0 = arith.constant 0 : i32
    %c0_i32_1 = arith.constant 0 : i32
    return %c0_i32, %c0_i32_0 : i32, i32
  }
  func.func @transform_4(%arg0: i32) -> (i32, i32) {
    %c0_i32 = arith.constant 0 : i32
    %c0_i32_0 = arith.constant 0 : i32
    %c0_i32_1 = arith.constant 0 : i32
    return %c0_i32, %c0_i32_0 : i32, i32
  }
  func.func @transform_5(%arg0: i32) -> (i32, i32, i32) {
    %c0_i32 = arith.constant 0 : i32
    %c0_i32_0 = arith.constant 0 : i32
    %c0_i32_1 = arith.constant 0 : i32
    return %arg0, %c0_i32, %c0_i32_0 : i32, i32, i32
  }
}

</mosaic_0001>

<llo_original>
// kernel: few_shot_transition_scorer.1
$region0: #{few_shot_transition_scorer.1}
  #allocation0 [shape = 'u32[]', space=smem, size = 0x4, offset = 0x4, fixed_abs, tag = 'smem constant byte address 0x4 - core index']
  #allocation1 [shape = 'u32[72,128]{1,0:T(1,128)}', space=vmem, size = 0x9000, scoped, tag = 'internal scratch']
  %s0 = inlined_call_operand.vmem [shape: f32[2,9,768], index: 0, kind: input, shape index: {}]
  %s1 = inlined_call_operand.hbm [shape: bf16[768,768], index: 1, kind: input, shape index: {}]
  %s2 = inlined_call_operand.hbm [shape: f32[1,768], index: 2, kind: input, shape index: {}]
  %s3 = inlined_call_operand.vmem [shape: bf16[768,8], index: 3, kind: input, shape index: {}]
  %s4 = inlined_call_operand.vmem [shape: f32[10,128], index: 4, kind: input, shape index: {}]
  %s5 = inlined_call_operand.vmem [shape: f32[2,9,128], index: 5, kind: output, shape index: {}]
  %s6 = sld [smem:[#allocation0]]
  $region61: #{few_shot_transition_scorer.1} parent=0
    _
  %s8 = ssub.s32 1, %s6
  %s9 = scalar_select 0, %s8, %s6
  $region1: #{few_shot_transition_scorer.1} parent=0
    #allocation2 [shape = 'u8[1179648]{0}', space=vmem, size = 0x120000, scoped, tag = 'input window, operand 1, single buffered']
    #allocation3 [shape = 's32[2]{0}', space=sflag, size = 0x8, scoped, tag = 'scoped memory for few_shot_transition_scorer.1']
    #allocation4 [shape = 'u8[3072]{0}', space=vmem, size = 0xc00, scoped, tag = 'input window, operand 2, single buffered']
    #allocation5 [shape = 's32[1]{0}', space=sflag, size = 0x4, scoped, tag = 'scoped memory for few_shot_transition_scorer.1']
    %10 = vsyncpa [#allocation3], 0
    %11 = vsyncpa [#allocation5], 0
    loop: start=0, step=1, limit=4
    $region2: #{few_shot_transition_scorer.1} parent=1 // loop_pre_header
      _
    $region3: #{few_shot_transition_scorer.1} parent=1 // loop_header
      %s13 = sphi 0, %s17
      %p14 = scmp.ge.s32.totalorder %s13, 4
      %s23 = sphi 0, %s25
      %s26 = sphi 0, %s23
      %s27 = sphi 0, %s26
      %s43 = sphi 0, %s27
      %s47 = sphi 0, %s47
      %s49 = sphi 0, %s47
      %s50 = sphi 0, %s49
      %s64 = sphi 0, %s50
      %s68 = sphi 0, %s68
      %s70 = sphi 0, %s68
      %s71 = sphi 0, %s70
      %s85 = sphi 0, %s71
      %s89 = sphi 0, %s89
      %s91 = sphi 0, %s89
      %s92 = sphi 0, %s91
      %s106 = sphi 0, %s92
      %s110 = sphi 0, %s110
      %s112 = sphi 0, %s110
      %s113 = sphi 0, %s112
      %s127 = sphi 0, %s113
      %s133 = sphi 0, %s135
      %s136 = sphi 0, %s133
      %s137 = sphi 0, %s136
      %s153 = sphi 0, %s137
    $region4: #{few_shot_transition_scorer.1} parent=1 // loop_header_branch
      %16 = sbr.rel (%p14) target = $region8
    $region5: #{few_shot_transition_scorer.1} parent=1 // loop_body
      %s18 = ssub.s32 %s13, 1
      %s19 = ssub.s32 %s13, 2
      %s20 = sadd.s32 %s13, 1
      %s21 = ssub.s32 %s13, %s20
      %p22 = scmp.eq.s32.totalorder %s21, 0
      %s24 = sadd.s32 %s23, 1
      %s25 = scalar_select %p22, %s23, %s24
      %p28 = pneg %p22
      %p29 = scmp.eq.s32.totalorder %s13, 1
      %p30 = por %p28, %p29
      %p31 = scmp.ne.s32.totalorder %s23, %s26
      %p32 = scmp.eq.s32.totalorder %s13, 0
      %p33 = por %p31, %p32
      %p34 = scmp.ne.s32.totalorder %s23, %s26
      %p35 = scmp.eq.s32.totalorder %s18, 1
      %p36 = por %p34, %p35
      %p37 = scmp.ne.s32.totalorder %s26, %s27
      %p38 = scmp.eq.s32.totalorder %s18, 0
      %p39 = por %p37, %p38
      %p40 = scmp.ne.s32.totalorder %s26, %s27
      %p41 = scmp.eq.s32.totalorder %s19, 1
      %p42 = por %p40, %p41
      %p44 = scmp.ne.s32.totalorder %s27, %s43
      %p45 = scmp.eq.s32.totalorder %s19, 0
      %p46 = por %p44, %p45
      %s48 = sadd.s32 %s47, 1
      %p51 = scmp.eq.s32.totalorder %s13, 1
      %p52 = scmp.ne.s32.totalorder %s47, %s49
      %p53 = scmp.eq.s32.totalorder %s13, 0
      %p54 = por %p52, %p53
      %p55 = scmp.ne.s32.totalorder %s47, %s49
      %p56 = scmp.eq.s32.totalorder %s18, 1
      %p57 = por %p55, %p56
      %p58 = scmp.ne.s32.totalorder %s49, %s50
      %p59 = scmp.eq.s32.totalorder %s18, 0
      %p60 = por %p58, %p59
      %p61 = scmp.ne.s32.totalorder %s49, %s50
      %p62 = scmp.eq.s32.totalorder %s19, 1
      %p63 = por %p61, %p62
      %p65 = scmp.ne.s32.totalorder %s50, %s64
      %p66 = scmp.eq.s32.totalorder %s19, 0
      %p67 = por %p65, %p66
      %s69 = sadd.s32 %s68, 1
      %p72 = scmp.eq.s32.totalorder %s13, 1
      %p73 = scmp.ne.s32.totalorder %s68, %s70
      %p74 = scmp.eq.s32.totalorder %s13, 0
      %p75 = por %p73, %p74
      %p76 = scmp.ne.s32.totalorder %s68, %s70
      %p77 = scmp.eq.s32.totalorder %s18, 1
      %p78 = por %p76, %p77
      %p79 = scmp.ne.s32.totalorder %s70, %s71
      %p80 = scmp.eq.s32.totalorder %s18, 0
      %p81 = por %p79, %p80
      %p82 = scmp.ne.s32.totalorder %s70, %s71
      %p83 = scmp.eq.s32.totalorder %s19, 1
      %p84 = por %p82, %p83
      %p86 = scmp.ne.s32.totalorder %s71, %s85
      %p87 = scmp.eq.s32.totalorder %s19, 0
      %p88 = por %p86, %p87
      %s90 = sadd.s32 %s89, 1
      %p93 = scmp.eq.s32.totalorder %s13, 1
      %p94 = scmp.ne.s32.totalorder %s89, %s91
      %p95 = scmp.eq.s32.totalorder %s13, 0
      %p96 = por %p94, %p95
      %p97 = scmp.ne.s32.totalorder %s89, %s91
      %p98 = scmp.eq.s32.totalorder %s18, 1
      %p99 = por %p97, %p98
      %p100 = scmp.ne.s32.totalorder %s91, %s92
      %p101 = scmp.eq.s32.totalorder %s18, 0
      %p102 = por %p100, %p101
      %p103 = scmp.ne.s32.totalorder %s91, %s92
      %p104 = scmp.eq.s32.totalorder %s19, 1
      %p105 = por %p103, %p104
      %p107 = scmp.ne.s32.totalorder %s92, %s106
      %p108 = scmp.eq.s32.totalorder %s19, 0
      %p109 = por %p107, %p108
      %s111 = sadd.s32 %s110, 1
      %p114 = scmp.eq.s32.totalorder %s13, 1
      %p115 = scmp.ne.s32.totalorder %s110, %s112
      %p116 = scmp.eq.s32.totalorder %s13, 0
      %p117 = por %p115, %p116
      %p118 = scmp.ne.s32.totalorder %s110, %s112
      %p119 = scmp.eq.s32.totalorder %s18, 1
      %p120 = por %p118, %p119
      %p121 = scmp.ne.s32.totalorder %s112, %s113
      %p122 = scmp.eq.s32.totalorder %s18, 0
      %p123 = por %p121, %p122
      %p124 = scmp.ne.s32.totalorder %s112, %s113
      %p125 = scmp.eq.s32.totalorder %s19, 1
      %p126 = por %p124, %p125
      %p128 = scmp.ne.s32.totalorder %s113, %s127
      %p129 = scmp.eq.s32.totalorder %s19, 0
      %p130 = por %p128, %p129
      %s131 = ssub.s32 %s13, %s20
      %p132 = scmp.eq.s32.totalorder %s131, 0
      %s134 = sadd.s32 %s133, 1
      %s135 = scalar_select %p132, %s133, %s134
      %p138 = pneg %p132
      %p139 = scmp.eq.s32.totalorder %s13, 1
      %p140 = por %p138, %p139
      %p141 = scmp.ne.s32.totalorder %s133, %s136
      %p142 = scmp.eq.s32.totalorder %s13, 0
      %p143 = por %p141, %p142
      %p144 = scmp.ne.s32.totalorder %s133, %s136
      %p145 = scmp.eq.s32.totalorder %s18, 1
      %p146 = por %p144, %p145
      %p147 = scmp.ne.s32.totalorder %s136, %s137
      %p148 = scmp.eq.s32.totalorder %s18, 0
      %p149 = por %p147, %p148
      %p150 = scmp.ne.s32.totalorder %s136, %s137
      %p151 = scmp.eq.s32.totalorder %s19, 1
      %p152 = por %p150, %p151
      %p154 = scmp.ne.s32.totalorder %s137, %s153
      %p155 = scmp.eq.s32.totalorder %s19, 0
      %p156 = por %p154, %p155
      %p157 = scmp.le.s32.totalorder 1, %s13
      %p158 = scmp.lt.s32.totalorder %s13, 3
      %p159 = pnand %p157, %p158
      %p160 = pneg %p159
      // Predicated region
      $region9: #{few_shot_transition_scorer.1} parent=5 // pred_check
        _
      $region10: #{few_shot_transition_scorer.1} parent=5 // pred_check_branch
        %162 = sbr.rel (%p159) target = $region12
      $region11: #{few_shot_transition_scorer.1} parent=5 // pred_region
        %s163 = ssub.s32 %s13, 1
        // Predicated region
        $region13: #{few_shot_transition_scorer.1} parent=11 // pred_check
          %p164 = pneg %p60
        $region14: #{few_shot_transition_scorer.1} parent=11 // pred_check_branch
          %166 = sbr.rel (%p164) target = $region16
        $region15: #{few_shot_transition_scorer.1} parent=11 // pred_region
          %168 = vsyncadd [#allocation3], 0
          %s169 = sshll.u32 %s1, 4
          %s170 = int_to_ptr.hbm [resolvable:$true] %s169
          %s171 = sshll.u32 [#allocation2], 4
          %s172 = int_to_ptr.vmem [resolvable:$true] %s171
          %177 = dma.hbm_to_vmem [thread:$0]  %s170, 36864, %s172, [#allocation3], 384, 384, 24
        $region16: #{few_shot_transition_scorer.1} parent=11 // pred_fallthru
          _
        // Predicated region
        $region17: #{few_shot_transition_scorer.1} parent=11 // pred_check
          %p178 = pneg %p81
        $region18: #{few_shot_transition_scorer.1} parent=11 // pred_check_branch
          %180 = sbr.rel (%p178) target = $region20
        $region19: #{few_shot_transition_scorer.1} parent=11 // pred_region
          %182 = vsyncadd [#allocation5], 0
          %s184 = sshll.u32 %s2, 4
          %s185 = int_to_ptr.hbm [resolvable:$true] %s184
          %s186 = sshll.u32 [#allocation4], 4
          %s187 = int_to_ptr.vmem [resolvable:$true] %s186
          %189 = dma.hbm_to_vmem [thread:$0]  %s185, 96, %s187, [#allocation5]
        $region20: #{few_shot_transition_scorer.1} parent=11 // pred_fallthru
          _
        // Predicated region
        $region21: #{few_shot_transition_scorer.1} parent=11 // pred_check
          %p190 = pneg %p102
        $region22: #{few_shot_transition_scorer.1} parent=11 // pred_check_branch
          %192 = sbr.rel (%p190) target = $region24
        $region23: #{few_shot_transition_scorer.1} parent=11 // pred_region
          _
        $region24: #{few_shot_transition_scorer.1} parent=11 // pred_fallthru
          _
        // Predicated region
        $region25: #{few_shot_transition_scorer.1} parent=11 // pred_check
          %p193 = pneg %p123
        $region26: #{few_shot_transition_scorer.1} parent=11 // pred_check_branch
          %195 = sbr.rel (%p193) target = $region28
        $region27: #{few_shot_transition_scorer.1} parent=11 // pred_region
          _
        $region28: #{few_shot_transition_scorer.1} parent=11 // pred_fallthru
          _
      $region12: #{few_shot_transition_scorer.1} parent=5 // pred_fallthru
        _
      %p196 = scmp.lt.s32.totalorder %s13, 2
      // Predicated region
      $region29: #{few_shot_transition_scorer.1} parent=5 // pred_check
        %p197 = pneg %p196
      $region30: #{few_shot_transition_scorer.1} parent=5 // pred_check_branch
        %199 = sbr.rel (%p197) target = $region32
      $region31: #{few_shot_transition_scorer.1} parent=5 // pred_region
        // Predicated region
        $region33: #{few_shot_transition_scorer.1} parent=31 // pred_check
          %p200 = pneg %p33
        $region34: #{few_shot_transition_scorer.1} parent=31 // pred_check_branch
          %202 = sbr.rel (%p200) target = $region36
        $region35: #{few_shot_transition_scorer.1} parent=31 // pred_region
          %p203 = scmp.lt.s32.totalorder %s13, 1
          %s204 = scalar_select %p203, %s13, 1
          %s205 = smul.addr %s204, 12
          %s206 = smul.addr %s205, 8
          %s207 = scalar_lea.vmem %s0, %s206
        $region36: #{few_shot_transition_scorer.1} parent=31 // pred_fallthru
          _
      $region32: #{few_shot_transition_scorer.1} parent=5 // pred_fallthru
        _
      %p208 = scmp.le.s32.totalorder 1, %s13
      %p209 = scmp.lt.s32.totalorder %s13, 3
      %p210 = pnand %p208, %p209
      %p211 = pneg %p210
      // Predicated region
      $region37: #{few_shot_transition_scorer.1} parent=5 // pred_check
        _
      $region38: #{few_shot_transition_scorer.1} parent=5 // pred_check_branch
        %213 = sbr.rel (%p210) target = $region40
      $region39: #{few_shot_transition_scorer.1} parent=5 // pred_region
        %s214 = ssub.s32 %s13, 1
        // Predicated region
        $region41: #{few_shot_transition_scorer.1} parent=39 // pred_check
          %p215 = pneg %p60
        $region42: #{few_shot_transition_scorer.1} parent=39 // pred_check_branch
          %217 = sbr.rel (%p215) target = $region44
        $region43: #{few_shot_transition_scorer.1} parent=39 // pred_region
          %219 = dma.done [#allocation3], 36864
        $region44: #{few_shot_transition_scorer.1} parent=39 // pred_fallthru
          _
        // Predicated region
        $region45: #{few_shot_transition_scorer.1} parent=39 // pred_check
          %p220 = pneg %p81
        $region46: #{few_shot_transition_scorer.1} parent=39 // pred_check_branch
          %222 = sbr.rel (%p220) target = $region48
        $region47: #{few_shot_transition_scorer.1} parent=39 // pred_region
          %224 = dma.done [#allocation5], 96
        $region48: #{few_shot_transition_scorer.1} parent=39 // pred_fallthru
          _
        %p225 = scmp.lt.s32.totalorder %s18, 1
        %s226 = scalar_select %p225, %s18, 1
        %s227 = smul.addr %s226, 12
        %s228 = smul.addr %s227, 8
        %s229 = scalar_lea.vmem %s0, %s228
        %p230 = pneg %p39
        %p231 = pneg %p36
        %p232 = pneg %p60
        %p233 = pneg %p57
        %p234 = pneg %p81
        %p235 = pneg %p78
        %p236 = pneg %p102
        %p237 = pneg %p99
        %p238 = pneg %p123
        %p239 = pneg %p120
        %p240 = pneg %p149
        %p241 = pneg %p146
        %p242 = scmp.lt.s32.totalorder %s18, 1
        %s243 = scalar_select %p242, %s18, 1
        %s244 = smul.addr %s243, 2
        %s245 = smul.addr %s244, 8
        %s246 = scalar_lea.vmem %s5, %s245
        %p247 = scmp.lt.s32.totalorder %s18, 1
        %s248 = scalar_select %p247, %s18, 1
        %s249 = smul.addr %s248, 12
        %s250 = smul.addr %s249, 8
        %s251 = scalar_lea.vmem %s0, %s250
        %p252 = scmp.lt.s32.totalorder %s18, 1
        %s253 = scalar_select %p252, %s18, 1
        %s254 = smul.addr %s253, 2
        %s255 = smul.addr %s254, 8
        %s256 = scalar_lea.vmem %s5, %s255
        %v257 = vld [vmem:[%s251] sm:$0xff]
        %v258 = vld [vmem:[%s251 + $0x8] sm:$0xff]
        %v259 = vld [vmem:[%s251 + $0x10] sm:$0xff]
        %v260 = vld [vmem:[%s251 + $0x18] sm:$0xff]
        %v261 = vld [vmem:[%s251 + $0x20] sm:$0xff]
        %v262 = vld [vmem:[%s251 + $0x28] sm:$0xff]
        %v263 = vld [vmem:[%s251 + $0x30] sm:$0x1]
        %v264 = vld [vmem:[%s251 + $0x38] sm:$0x1]
        %v265 = vld [vmem:[%s251 + $0x40] sm:$0x1]
        %v266 = vld [vmem:[%s251 + $0x48] sm:$0x1]
        %v267 = vld [vmem:[%s251 + $0x50] sm:$0x1]
        %v268 = vld [vmem:[%s251 + $0x58] sm:$0x1]
        %v269 = vpack.c.bf16 %v263, %v257
        %v270 = vpack.c.bf16 %v264, %v258
        %v271 = vpack.c.bf16 %v265, %v259
        %v272 = vpack.c.bf16 %v266, %v260
        %v273 = vpack.c.bf16 %v267, %v261
        %v274 = vpack.c.bf16 %v268, %v262
        %v275 = vld [vmem:[#allocation2] sm:$0xff]
        %v276 = vld [vmem:[#allocation2 + $0x8] sm:$0xff]
        %v277 = vld [vmem:[#allocation2 + $0x10] sm:$0xff]
        %v278 = vld [vmem:[#allocation2 + $0x18] sm:$0xff]
        %v279 = vld [vmem:[#allocation2 + $0x20] sm:$0xff]
        %v280 = vld [vmem:[#allocation2 + $0x28] sm:$0xff]
        %v281 = vld [vmem:[#allocation2 + $0x30] sm:$0xff]
        %v282 = vld [vmem:[#allocation2 + $0x38] sm:$0xff]
        %v283 = vld [vmem:[#allocation2 + $0x40] sm:$0xff]
        %v284 = vld [vmem:[#allocation2 + $0x48] sm:$0xff]
        %v285 = vld [vmem:[#allocation2 + $0x50] sm:$0xff]
        %v286 = vld [vmem:[#allocation2 + $0x58] sm:$0xff]
        %v287 = vld [vmem:[#allocation2 + $0x60] sm:$0xff]
        %v288 = vld [vmem:[#allocation2 + $0x68] sm:$0xff]
        %v289 = vld [vmem:[#allocation2 + $0x70] sm:$0xff]
        %v290 = vld [vmem:[#allocation2 + $0x78] sm:$0xff]
        %v291 = vld [vmem:[#allocation2 + $0x80] sm:$0xff]
        %v292 = vld [vmem:[#allocation2 + $0x88] sm:$0xff]
        %v293 = vld [vmem:[#allocation2 + $0x90] sm:$0xff]
        %v294 = vld [vmem:[#allocation2 + $0x98] sm:$0xff]
        %v295 = vld [vmem:[#allocation2 + $0xa0] sm:$0xff]
        %v296 = vld [vmem:[#allocation2 + $0xa8] sm:$0xff]
        %v297 = vld [vmem:[#allocation2 + $0xb0] sm:$0xff]
        %v298 = vld [vmem:[#allocation2 + $0xb8] sm:$0xff]
        %v299 = vld [vmem:[#allocation2 + $0xc0] sm:$0xff]
        %v300 = vld [vmem:[#allocation2 + $0xc8] sm:$0xff]
        %v301 = vld [vmem:[#allocation2 + $0xd0] sm:$0xff]
        %v302 = vld [vmem:[#allocation2 + $0xd8] sm:$0xff]
        %v303 = vld [vmem:[#allocation2 + $0xe0] sm:$0xff]
        %v304 = vld [vmem:[#allocation2 + $0xe8] sm:$0xff]
        %v305 = vld [vmem:[#allocation2 + $0xf0] sm:$0xff]
        %v306 = vld [vmem:[#allocation2 + $0xf8] sm:$0xff]
        %v307 = vld [vmem:[#allocation2 + $0x100] sm:$0xff]
        %v308 = vld [vmem:[#allocation2 + $0x108] sm:$0xff]
        %v309 = vld [vmem:[#allocation2 + $0x110] sm:$0xff]
        %v310 = vld [vmem:[#allocation2 + $0x118] sm:$0xff]
        %v311 = vld [vmem:[#allocation2 + $0x120] sm:$0xff]
        %v312 = vld [vmem:[#allocation2 + $0x128] sm:$0xff]
        %v313 = vld [vmem:[#allocation2 + $0x130] sm:$0xff]
        %v314 = vld [vmem:[#allocation2 + $0x138] sm:$0xff]
        %v315 = vld [vmem:[#allocation2 + $0x140] sm:$0xff]
        %v316 = vld [vmem:[#allocation2 + $0x148] sm:$0xff]
        %v317 = vld [vmem:[#allocation2 + $0x150] sm:$0xff]
        %v318 = vld [vmem:[#allocation2 + $0x158] sm:$0xff]
        %v319 = vld [vmem:[#allocation2 + $0x160] sm:$0xff]
        %v320 = vld [vmem:[#allocation2 + $0x168] sm:$0xff]
        %v321 = vld [vmem:[#allocation2 + $0x170] sm:$0xff]
        %v322 = vld [vmem:[#allocation2 + $0x178] sm:$0xff]
        %v323 = vld [vmem:[#allocation2 + $0x180] sm:$0xff]
        %v324 = vld [vmem:[#allocation2 + $0x188] sm:$0xff]
        %v325 = vld [vmem:[#allocation2 + $0x190] sm:$0xff]
        %v326 = vld [vmem:[#allocation2 + $0x198] sm:$0xff]
        %v327 = vld [vmem:[#allocation2 + $0x1a0] sm:$0xff]
        %v328 = vld [vmem:[#allocation2 + $0x1a8] sm:$0xff]
        %v329 = vld [vmem:[#allocation2 + $0x1b0] sm:$0xff]
        %v330 = vld [vmem:[#allocation2 + $0x1b8] sm:$0xff]
        %v331 = vld [vmem:[#allocation2 + $0x1c0] sm:$0xff]
        %v332 = vld [vmem:[#allocation2 + $0x1c8] sm:$0xff]
        %v333 = vld [vmem:[#allocation2 + $0x1d0] sm:$0xff]
        %v334 = vld [vmem:[#allocation2 + $0x1d8] sm:$0xff]
        %v335 = vld [vmem:[#allocation2 + $0x1e0] sm:$0xff]
        %v336 = vld [vmem:[#allocation2 + $0x1e8] sm:$0xff]
        %v337 = vld [vmem:[#allocation2 + $0x1f0] sm:$0xff]
        %v338 = vld [vmem:[#allocation2 + $0x1f8] sm:$0xff]
        %v339 = vld [vmem:[#allocation2 + $0x200] sm:$0xff]
        %v340 = vld [vmem:[#allocation2 + $0x208] sm:$0xff]
        %v341 = vld [vmem:[#allocation2 + $0x210] sm:$0xff]
        %v342 = vld [vmem:[#allocation2 + $0x218] sm:$0xff]
        %v343 = vld [vmem:[#allocation2 + $0x220] sm:$0xff]
        %v344 = vld [vmem:[#allocation2 + $0x228] sm:$0xff]
        %v345 = vld [vmem:[#allocation2 + $0x230] sm:$0xff]
        %v346 = vld [vmem:[#allocation2 + $0x238] sm:$0xff]
        %v347 = vld [vmem:[#allocation2 + $0x240] sm:$0xff]
        %v348 = vld [vmem:[#allocation2 + $0x248] sm:$0xff]
        %v349 = vld [vmem:[#allocation2 + $0x250] sm:$0xff]
        %v350 = vld [vmem:[#allocation2 + $0x258] sm:$0xff]
        %v351 = vld [vmem:[#allocation2 + $0x260] sm:$0xff]
        %v352 = vld [vmem:[#allocation2 + $0x268] sm:$0xff]
        %v353 = vld [vmem:[#allocation2 + $0x270] sm:$0xff]
        %v354 = vld [vmem:[#allocation2 + $0x278] sm:$0xff]
        %v355 = vld [vmem:[#allocation2 + $0x280] sm:$0xff]
        %v356 = vld [vmem:[#allocation2 + $0x288] sm:$0xff]
        %v357 = vld [vmem:[#allocation2 + $0x290] sm:$0xff]
        %v358 = vld [vmem:[#allocation2 + $0x298] sm:$0xff]
        %v359 = vld [vmem:[#allocation2 + $0x2a0] sm:$0xff]
        %v360 = vld [vmem:[#allocation2 + $0x2a8] sm:$0xff]
        %v361 = vld [vmem:[#allocation2 + $0x2b0] sm:$0xff]
        %v362 = vld [vmem:[#allocation2 + $0x2b8] sm:$0xff]
        %v363 = vld [vmem:[#allocation2 + $0x2c0] sm:$0xff]
        %v364 = vld [vmem:[#allocation2 + $0x2c8] sm:$0xff]
        %v365 = vld [vmem:[#allocation2 + $0x2d0] sm:$0xff]
        %v366 = vld [vmem:[#allocation2 + $0x2d8] sm:$0xff]
        %v367 = vld [vmem:[#allocation2 + $0x2e0] sm:$0xff]
        %v368 = vld [vmem:[#allocation2 + $0x2e8] sm:$0xff]
        %v369 = vld [vmem:[#allocation2 + $0x2f0] sm:$0xff]
        %v370 = vld [vmem:[#allocation2 + $0x2f8] sm:$0xff]
        %v371 = vld [vmem:[#allocation2 + $0x300] sm:$0xff]
        %v372 = vld [vmem:[#allocation2 + $0x308] sm:$0xff]
        %v373 = vld [vmem:[#allocation2 + $0x310] sm:$0xff]
        %v374 = vld [vmem:[#allocation2 + $0x318] sm:$0xff]
        %v375 = vld [vmem:[#allocation2 + $0x320] sm:$0xff]
        %v376 = vld [vmem:[#allocation2 + $0x328] sm:$0xff]
        %v377 = vld [vmem:[#allocation2 + $0x330] sm:$0xff]
        %v378 = vld [vmem:[#allocation2 + $0x338] sm:$0xff]
        %v379 = vld [vmem:[#allocation2 + $0x340] sm:$0xff]
        %v380 = vld [vmem:[#allocation2 + $0x348] sm:$0xff]
        %v381 = vld [vmem:[#allocation2 + $0x350] sm:$0xff]
        %v382 = vld [vmem:[#allocation2 + $0x358] sm:$0xff]
        %v383 = vld [vmem:[#allocation2 + $0x360] sm:$0xff]
        %v384 = vld [vmem:[#allocation2 + $0x368] sm:$0xff]
        %v385 = vld [vmem:[#allocation2 + $0x370] sm:$0xff]
        %v386 = vld [vmem:[#allocation2 + $0x378] sm:$0xff]
        %v387 = vld [vmem:[#allocation2 + $0x380] sm:$0xff]
        %v388 = vld [vmem:[#allocation2 + $0x388] sm:$0xff]
        %v389 = vld [vmem:[#allocation2 + $0x390] sm:$0xff]
        %v390 = vld [vmem:[#allocation2 + $0x398] sm:$0xff]
        %v391 = vld [vmem:[#allocation2 + $0x3a0] sm:$0xff]
        %v392 = vld [vmem:[#allocation2 + $0x3a8] sm:$0xff]
        %v393 = vld [vmem:[#allocation2 + $0x3b0] sm:$0xff]
        %v394 = vld [vmem:[#allocation2 + $0x3b8] sm:$0xff]
        %v395 = vld [vmem:[#allocation2 + $0x3c0] sm:$0xff]
        %v396 = vld [vmem:[#allocation2 + $0x3c8] sm:$0xff]
        %v397 = vld [vmem:[#allocation2 + $0x3d0] sm:$0xff]
        %v398 = vld [vmem:[#allocation2 + $0x3d8] sm:$0xff]
        %v399 = vld [vmem:[#allocation2 + $0x3e0] sm:$0xff]
        %v400 = vld [vmem:[#allocation2 + $0x3e8] sm:$0xff]
        %v401 = vld [vmem:[#allocation2 + $0x3f0] sm:$0xff]
        %v402 = vld [vmem:[#allocation2 + $0x3f8] sm:$0xff]
        %v403 = vld [vmem:[#allocation2 + $0x400] sm:$0xff]
        %v404 = vld [vmem:[#allocation2 + $0x408] sm:$0xff]
        %v405 = vld [vmem:[#allocation2 + $0x410] sm:$0xff]
        %v406 = vld [vmem:[#allocation2 + $0x418] sm:$0xff]
        %v407 = vld [vmem:[#allocation2 + $0x420] sm:$0xff]
        %v408 = vld [vmem:[#allocation2 + $0x428] sm:$0xff]
        %v409 = vld [vmem:[#allocation2 + $0x430] sm:$0xff]
        %v410 = vld [vmem:[#allocation2 + $0x438] sm:$0xff]
        %v411 = vld [vmem:[#allocation2 + $0x440] sm:$0xff]
        %v412 = vld [vmem:[#allocation2 + $0x448] sm:$0xff]
        %v413 = vld [vmem:[#allocation2 + $0x450] sm:$0xff]
        %v414 = vld [vmem:[#allocation2 + $0x458] sm:$0xff]
        %v415 = vld [vmem:[#allocation2 + $0x460] sm:$0xff]
        %v416 = vld [vmem:[#allocation2 + $0x468] sm:$0xff]
        %v417 = vld [vmem:[#allocation2 + $0x470] sm:$0xff]
        %v418 = vld [vmem:[#allocation2 + $0x478] sm:$0xff]
        %v419 = vld [vmem:[#allocation2 + $0x480] sm:$0xff]
        %v420 = vld [vmem:[#allocation2 + $0x488] sm:$0xff]
        %v421 = vld [vmem:[#allocation2 + $0x490] sm:$0xff]
        %v422 = vld [vmem:[#allocation2 + $0x498] sm:$0xff]
        %v423 = vld [vmem:[#allocation2 + $0x4a0] sm:$0xff]
        %v424 = vld [vmem:[#allocation2 + $0x4a8] sm:$0xff]
        %v425 = vld [vmem:[#allocation2 + $0x4b0] sm:$0xff]
        %v426 = vld [vmem:[#allocation2 + $0x4b8] sm:$0xff]
        %v427 = vld [vmem:[#allocation2 + $0x4c0] sm:$0xff]
        %v428 = vld [vmem:[#allocation2 + $0x4c8] sm:$0xff]
        %v429 = vld [vmem:[#allocation2 + $0x4d0] sm:$0xff]
        %v430 = vld [vmem:[#allocation2 + $0x4d8] sm:$0xff]
        %v431 = vld [vmem:[#allocation2 + $0x4e0] sm:$0xff]
        %v432 = vld [vmem:[#allocation2 + $0x4e8] sm:$0xff]
        %v433 = vld [vmem:[#allocation2 + $0x4f0] sm:$0xff]
        %v434 = vld [vmem:[#allocation2 + $0x4f8] sm:$0xff]
        %v435 = vld [vmem:[#allocation2 + $0x500] sm:$0xff]
        %v436 = vld [vmem:[#allocation2 + $0x508] sm:$0xff]
        %v437 = vld [vmem:[#allocation2 + $0x510] sm:$0xff]
        %v438 = vld [vmem:[#allocation2 + $0x518] sm:$0xff]
        %v439 = vld [vmem:[#allocation2 + $0x520] sm:$0xff]
        %v440 = vld [vmem:[#allocation2 + $0x528] sm:$0xff]
        %v441 = vld [vmem:[#allocation2 + $0x530] sm:$0xff]
        %v442 = vld [vmem:[#allocation2 + $0x538] sm:$0xff]
        %v443 = vld [vmem:[#allocation2 + $0x540] sm:$0xff]
        %v444 = vld [vmem:[#allocation2 + $0x548] sm:$0xff]
        %v445 = vld [vmem:[#allocation2 + $0x550] sm:$0xff]
        %v446 = vld [vmem:[#allocation2 + $0x558] sm:$0xff]
        %v447 = vld [vmem:[#allocation2 + $0x560] sm:$0xff]
        %v448 = vld [vmem:[#allocation2 + $0x568] sm:$0xff]
        %v449 = vld [vmem:[#allocation2 + $0x570] sm:$0xff]
        %v450 = vld [vmem:[#allocation2 + $0x578] sm:$0xff]
        %v451 = vld [vmem:[#allocation2 + $0x580] sm:$0xff]
        %v452 = vld [vmem:[#allocation2 + $0x588] sm:$0xff]
        %v453 = vld [vmem:[#allocation2 + $0x590] sm:$0xff]
        %v454 = vld [vmem:[#allocation2 + $0x598] sm:$0xff]
        %v455 = vld [vmem:[#allocation2 + $0x5a0] sm:$0xff]
        %v456 = vld [vmem:[#allocation2 + $0x5a8] sm:$0xff]
        %v457 = vld [vmem:[#allocation2 + $0x5b0] sm:$0xff]
        %v458 = vld [vmem:[#allocation2 + $0x5b8] sm:$0xff]
        %v459 = vld [vmem:[#allocation2 + $0x5c0] sm:$0xff]
        %v460 = vld [vmem:[#allocation2 + $0x5c8] sm:$0xff]
        %v461 = vld [vmem:[#allocation2 + $0x5d0] sm:$0xff]
        %v462 = vld [vmem:[#allocation2 + $0x5d8] sm:$0xff]
        %v463 = vld [vmem:[#allocation2 + $0x5e0] sm:$0xff]
        %v464 = vld [vmem:[#allocation2 + $0x5e8] sm:$0xff]
        %v465 = vld [vmem:[#allocation2 + $0x5f0] sm:$0xff]
        %v466 = vld [vmem:[#allocation2 + $0x5f8] sm:$0xff]
        %v467 = vld [vmem:[#allocation2 + $0x600] sm:$0xff]
        %v468 = vld [vmem:[#allocation2 + $0x608] sm:$0xff]
        %v469 = vld [vmem:[#allocation2 + $0x610] sm:$0xff]
        %v470 = vld [vmem:[#allocation2 + $0x618] sm:$0xff]
        %v471 = vld [vmem:[#allocation2 + $0x620] sm:$0xff]
        %v472 = vld [vmem:[#allocation2 + $0x628] sm:$0xff]
        %v473 = vld [vmem:[#allocation2 + $0x630] sm:$0xff]
        %v474 = vld [vmem:[#allocation2 + $0x638] sm:$0xff]
        %v475 = vld [vmem:[#allocation2 + $0x640] sm:$0xff]
        %v476 = vld [vmem:[#allocation2 + $0x648] sm:$0xff]
        %v477 = vld [vmem:[#allocation2 + $0x650] sm:$0xff]
        %v478 = vld [vmem:[#allocation2 + $0x658] sm:$0xff]
        %v479 = vld [vmem:[#allocation2 + $0x660] sm:$0xff]
        %v480 = vld [vmem:[#allocation2 + $0x668] sm:$0xff]
        %v481 = vld [vmem:[#allocation2 + $0x670] sm:$0xff]
        %v482 = vld [vmem:[#allocation2 + $0x678] sm:$0xff]
        %v483 = vld [vmem:[#allocation2 + $0x680] sm:$0xff]
        %v484 = vld [vmem:[#allocation2 + $0x688] sm:$0xff]
        %v485 = vld [vmem:[#allocation2 + $0x690] sm:$0xff]
        %v486 = vld [vmem:[#allocation2 + $0x698] sm:$0xff]
        %v487 = vld [vmem:[#allocation2 + $0x6a0] sm:$0xff]
        %v488 = vld [vmem:[#allocation2 + $0x6a8] sm:$0xff]
        %v489 = vld [vmem:[#allocation2 + $0x6b0] sm:$0xff]
        %v490 = vld [vmem:[#allocation2 + $0x6b8] sm:$0xff]
        %v491 = vld [vmem:[#allocation2 + $0x6c0] sm:$0xff]
        %v492 = vld [vmem:[#allocation2 + $0x6c8] sm:$0xff]
        %v493 = vld [vmem:[#allocation2 + $0x6d0] sm:$0xff]
        %v494 = vld [vmem:[#allocation2 + $0x6d8] sm:$0xff]
        %v495 = vld [vmem:[#allocation2 + $0x6e0] sm:$0xff]
        %v496 = vld [vmem:[#allocation2 + $0x6e8] sm:$0xff]
        %v497 = vld [vmem:[#allocation2 + $0x6f0] sm:$0xff]
        %v498 = vld [vmem:[#allocation2 + $0x6f8] sm:$0xff]
        %v499 = vld [vmem:[#allocation2 + $0x700] sm:$0xff]
        %v500 = vld [vmem:[#allocation2 + $0x708] sm:$0xff]
        %v501 = vld [vmem:[#allocation2 + $0x710] sm:$0xff]
        %v502 = vld [vmem:[#allocation2 + $0x718] sm:$0xff]
        %v503 = vld [vmem:[#allocation2 + $0x720] sm:$0xff]
        %v504 = vld [vmem:[#allocation2 + $0x728] sm:$0xff]
        %v505 = vld [vmem:[#allocation2 + $0x730] sm:$0xff]
        %v506 = vld [vmem:[#allocation2 + $0x738] sm:$0xff]
        %v507 = vld [vmem:[#allocation2 + $0x740] sm:$0xff]
        %v508 = vld [vmem:[#allocation2 + $0x748] sm:$0xff]
        %v509 = vld [vmem:[#allocation2 + $0x750] sm:$0xff]
        %v510 = vld [vmem:[#allocation2 + $0x758] sm:$0xff]
        %v511 = vld [vmem:[#allocation2 + $0x760] sm:$0xff]
        %v512 = vld [vmem:[#allocation2 + $0x768] sm:$0xff]
        %v513 = vld [vmem:[#allocation2 + $0x770] sm:$0xff]
        %v514 = vld [vmem:[#allocation2 + $0x778] sm:$0xff]
        %v515 = vld [vmem:[#allocation2 + $0x780] sm:$0xff]
        %v516 = vld [vmem:[#allocation2 + $0x788] sm:$0xff]
        %v517 = vld [vmem:[#allocation2 + $0x790] sm:$0xff]
        %v518 = vld [vmem:[#allocation2 + $0x798] sm:$0xff]
        %v519 = vld [vmem:[#allocation2 + $0x7a0] sm:$0xff]
        %v520 = vld [vmem:[#allocation2 + $0x7a8] sm:$0xff]
        %v521 = vld [vmem:[#allocation2 + $0x7b0] sm:$0xff]
        %v522 = vld [vmem:[#allocation2 + $0x7b8] sm:$0xff]
        %v523 = vld [vmem:[#allocation2 + $0x7c0] sm:$0xff]
        %v524 = vld [vmem:[#allocation2 + $0x7c8] sm:$0xff]
        %v525 = vld [vmem:[#allocation2 + $0x7d0] sm:$0xff]
        %v526 = vld [vmem:[#allocation2 + $0x7d8] sm:$0xff]
        %v527 = vld [vmem:[#allocation2 + $0x7e0] sm:$0xff]
        %v528 = vld [vmem:[#allocation2 + $0x7e8] sm:$0xff]
        %v529 = vld [vmem:[#allocation2 + $0x7f0] sm:$0xff]
        %v530 = vld [vmem:[#allocation2 + $0x7f8] sm:$0xff]
        %v531 = vld [vmem:[#allocation2 + $0x800] sm:$0xff]
        %v532 = vld [vmem:[#allocation2 + $0x808] sm:$0xff]
        %v533 = vld [vmem:[#allocation2 + $0x810] sm:$0xff]
        %v534 = vld [vmem:[#allocation2 + $0x818] sm:$0xff]
        %v535 = vld [vmem:[#allocation2 + $0x820] sm:$0xff]
        %v536 = vld [vmem:[#allocation2 + $0x828] sm:$0xff]
        %v537 = vld [vmem:[#allocation2 + $0x830] sm:$0xff]
        %v538 = vld [vmem:[#allocation2 + $0x838] sm:$0xff]
        %v539 = vld [vmem:[#allocation2 + $0x840] sm:$0xff]
        %v540 = vld [vmem:[#allocation2 + $0x848] sm:$0xff]
        %v541 = vld [vmem:[#allocation2 + $0x850] sm:$0xff]
        %v542 = vld [vmem:[#allocation2 + $0x858] sm:$0xff]
        %v543 = vld [vmem:[#allocation2 + $0x860] sm:$0xff]
        %v544 = vld [vmem:[#allocation2 + $0x868] sm:$0xff]
        %v545 = vld [vmem:[#allocation2 + $0x870] sm:$0xff]
        %v546 = vld [vmem:[#allocation2 + $0x878] sm:$0xff]
        %v547 = vld [vmem:[#allocation2 + $0x880] sm:$0xff]
        %v548 = vld [vmem:[#allocation2 + $0x888] sm:$0xff]
        %v549 = vld [vmem:[#allocation2 + $0x890] sm:$0xff]
        %v550 = vld [vmem:[#allocation2 + $0x898] sm:$0xff]
        %v551 = vld [vmem:[#allocation2 + $0x8a0] sm:$0xff]
        %v552 = vld [vmem:[#allocation2 + $0x8a8] sm:$0xff]
        %v553 = vld [vmem:[#allocation2 + $0x8b0] sm:$0xff]
        %v554 = vld [vmem:[#allocation2 + $0x8b8] sm:$0xff]
        %v555 = vld [vmem:[#allocation2 + $0x8c0] sm:$0xff]
        %v556 = vld [vmem:[#allocation2 + $0x8c8] sm:$0xff]
        %v557 = vld [vmem:[#allocation2 + $0x8d0] sm:$0xff]
        %v558 = vld [vmem:[#allocation2 + $0x8d8] sm:$0xff]
        %v559 = vld [vmem:[#allocation2 + $0x8e0] sm:$0xff]
        %v560 = vld [vmem:[#allocation2 + $0x8e8] sm:$0xff]
        %v561 = vld [vmem:[#allocation2 + $0x8f0] sm:$0xff]
        %v562 = vld [vmem:[#allocation2 + $0x8f8] sm:$0xff]
        %v563 = vld [vmem:[#allocation4] sm:$0x3f]
        %v565 = vperm.slane %v563, 0
        %v566 = vperm.slane %v563, 1
        %v567 = vperm.slane %v563, 2
        %v568 = vperm.slane %v563, 3
        %v569 = vperm.slane %v563, 4
        %v570 = vperm.slane %v563, 5
        %v865 = vunpack.c.l.b16 %v275
        %v866 = vunpack.c.h.b16 %v275
        %v867 = vunpack.c.l.b16 %v276
        %v868 = vunpack.c.h.b16 %v276
        %v869 = vunpack.c.l.b16 %v277
        %v870 = vunpack.c.h.b16 %v277
        %v871 = vunpack.c.l.b16 %v278
        %v872 = vunpack.c.h.b16 %v278
        %v873 = vunpack.c.l.b16 %v279
        %v874 = vunpack.c.h.b16 %v279
        %v875 = vunpack.c.l.b16 %v280
        %v876 = vunpack.c.h.b16 %v280
        %v877 = vunpack.c.l.b16 %v281
        %v878 = vunpack.c.h.b16 %v281
        %v879 = vunpack.c.l.b16 %v282
        %v880 = vunpack.c.h.b16 %v282
        %v881 = vunpack.c.l.b16 %v283
        %v882 = vunpack.c.h.b16 %v283
        %v883 = vunpack.c.l.b16 %v284
        %v884 = vunpack.c.h.b16 %v284
        %v885 = vunpack.c.l.b16 %v285
        %v886 = vunpack.c.h.b16 %v285
        %v887 = vunpack.c.l.b16 %v286
        %v888 = vunpack.c.h.b16 %v286
        %v889 = vunpack.c.l.b16 %v287
        %v890 = vunpack.c.h.b16 %v287
        %v891 = vunpack.c.l.b16 %v288
        %v892 = vunpack.c.h.b16 %v288
        %v893 = vunpack.c.l.b16 %v289
        %v894 = vunpack.c.h.b16 %v289
        %v895 = vunpack.c.l.b16 %v290
        %v896 = vunpack.c.h.b16 %v290
        %v897 = vunpack.c.l.b16 %v291
        %v898 = vunpack.c.h.b16 %v291
        %v899 = vunpack.c.l.b16 %v292
        %v900 = vunpack.c.h.b16 %v292
        %v901 = vunpack.c.l.b16 %v293
        %v902 = vunpack.c.h.b16 %v293
        %v903 = vunpack.c.l.b16 %v294
        %v904 = vunpack.c.h.b16 %v294
        %v905 = vunpack.c.l.b16 %v295
        %v906 = vunpack.c.h.b16 %v295
        %v907 = vunpack.c.l.b16 %v296
        %v908 = vunpack.c.h.b16 %v296
        %v909 = vunpack.c.l.b16 %v297
        %v910 = vunpack.c.h.b16 %v297
        %v911 = vunpack.c.l.b16 %v298
        %v912 = vunpack.c.h.b16 %v298
        %v913 = vunpack.c.l.b16 %v299
        %v914 = vunpack.c.h.b16 %v299
        %v915 = vunpack.c.l.b16 %v300
        %v916 = vunpack.c.h.b16 %v300
        %v917 = vunpack.c.l.b16 %v301
        %v918 = vunpack.c.h.b16 %v301
        %v919 = vunpack.c.l.b16 %v302
        %v920 = vunpack.c.h.b16 %v302
        %v921 = vunpack.c.l.b16 %v303
        %v922 = vunpack.c.h.b16 %v303
        %v923 = vunpack.c.l.b16 %v304
        %v924 = vunpack.c.h.b16 %v304
        %v925 = vunpack.c.l.b16 %v305
        %v926 = vunpack.c.h.b16 %v305
        %v927 = vunpack.c.l.b16 %v306
        %v928 = vunpack.c.h.b16 %v306
        %v929 = vunpack.c.l.b16 %v307
        %v930 = vunpack.c.h.b16 %v307
        %v931 = vunpack.c.l.b16 %v308
        %v932 = vunpack.c.h.b16 %v308
        %v933 = vunpack.c.l.b16 %v309
        %v934 = vunpack.c.h.b16 %v309
        %v935 = vunpack.c.l.b16 %v310
        %v936 = vunpack.c.h.b16 %v310
        %v937 = vunpack.c.l.b16 %v311
        %v938 = vunpack.c.h.b16 %v311
        %v939 = vunpack.c.l.b16 %v312
        %v940 = vunpack.c.h.b16 %v312
        %v941 = vunpack.c.l.b16 %v313
        %v942 = vunpack.c.h.b16 %v313
        %v943 = vunpack.c.l.b16 %v314
        %v944 = vunpack.c.h.b16 %v314
        %v945 = vunpack.c.l.b16 %v315
        %v946 = vunpack.c.h.b16 %v315
        %v947 = vunpack.c.l.b16 %v316
        %v948 = vunpack.c.h.b16 %v316
        %v949 = vunpack.c.l.b16 %v317
        %v950 = vunpack.c.h.b16 %v317
        %v951 = vunpack.c.l.b16 %v318
        %v952 = vunpack.c.h.b16 %v318
        %v953 = vunpack.c.l.b16 %v319
        %v954 = vunpack.c.h.b16 %v319
        %v955 = vunpack.c.l.b16 %v320
        %v956 = vunpack.c.h.b16 %v320
        %v957 = vunpack.c.l.b16 %v321
        %v958 = vunpack.c.h.b16 %v321
        %v959 = vunpack.c.l.b16 %v322
        %v960 = vunpack.c.h.b16 %v322
        %v961 = vunpack.c.l.b16 %v323
        %v962 = vunpack.c.h.b16 %v323
        %v963 = vunpack.c.l.b16 %v324
        %v964 = vunpack.c.h.b16 %v324
        %v965 = vunpack.c.l.b16 %v325
        %v966 = vunpack.c.h.b16 %v325
        %v967 = vunpack.c.l.b16 %v326
        %v968 = vunpack.c.h.b16 %v326
        %v969 = vunpack.c.l.b16 %v327
        %v970 = vunpack.c.h.b16 %v327
        %v971 = vunpack.c.l.b16 %v328
        %v972 = vunpack.c.h.b16 %v328
        %v973 = vunpack.c.l.b16 %v329
        %v974 = vunpack.c.h.b16 %v329
        %v975 = vunpack.c.l.b16 %v330
        %v976 = vunpack.c.h.b16 %v330
        %v977 = vunpack.c.l.b16 %v331
        %v978 = vunpack.c.h.b16 %v331
        %v979 = vunpack.c.l.b16 %v332
        %v980 = vunpack.c.h.b16 %v332
        %v981 = vunpack.c.l.b16 %v333
        %v982 = vunpack.c.h.b16 %v333
        %v983 = vunpack.c.l.b16 %v334
        %v984 = vunpack.c.h.b16 %v334
        %v985 = vunpack.c.l.b16 %v335
        %v986 = vunpack.c.h.b16 %v335
        %v987 = vunpack.c.l.b16 %v336
        %v988 = vunpack.c.h.b16 %v336
        %v989 = vunpack.c.l.b16 %v337
        %v990 = vunpack.c.h.b16 %v337
        %v991 = vunpack.c.l.b16 %v338
        %v992 = vunpack.c.h.b16 %v338
        %v993 = vunpack.c.l.b16 %v339
        %v994 = vunpack.c.h.b16 %v339
        %v995 = vunpack.c.l.b16 %v340
        %v996 = vunpack.c.h.b16 %v340
        %v997 = vunpack.c.l.b16 %v341
        %v998 = vunpack.c.h.b16 %v341
        %v999 = vunpack.c.l.b16 %v342
        %v1000 = vunpack.c.h.b16 %v342
        %v1001 = vunpack.c.l.b16 %v343
        %v1002 = vunpack.c.h.b16 %v343
        %v1003 = vunpack.c.l.b16 %v344
        %v1004 = vunpack.c.h.b16 %v344
        %v1005 = vunpack.c.l.b16 %v345
        %v1006 = vunpack.c.h.b16 %v345
        %v1007 = vunpack.c.l.b16 %v346
        %v1008 = vunpack.c.h.b16 %v346
        %v1009 = vunpack.c.l.b16 %v347
        %v1010 = vunpack.c.h.b16 %v347
        %v1011 = vunpack.c.l.b16 %v348
        %v1012 = vunpack.c.h.b16 %v348
        %v1013 = vunpack.c.l.b16 %v349
        %v1014 = vunpack.c.h.b16 %v349
        %v1015 = vunpack.c.l.b16 %v350
        %v1016 = vunpack.c.h.b16 %v350
        %v1017 = vunpack.c.l.b16 %v351
        %v1018 = vunpack.c.h.b16 %v351
        %v1019 = vunpack.c.l.b16 %v352
        %v1020 = vunpack.c.h.b16 %v352
        %v1021 = vunpack.c.l.b16 %v353
        %v1022 = vunpack.c.h.b16 %v353
        %v1023 = vunpack.c.l.b16 %v354
        %v1024 = vunpack.c.h.b16 %v354
        %v1025 = vunpack.c.l.b16 %v355
        %v1026 = vunpack.c.h.b16 %v355
        %v1027 = vunpack.c.l.b16 %v356
        %v1028 = vunpack.c.h.b16 %v356
        %v1029 = vunpack.c.l.b16 %v357
        %v1030 = vunpack.c.h.b16 %v357
        %v1031 = vunpack.c.l.b16 %v358
        %v1032 = vunpack.c.h.b16 %v358
        %v1033 = vunpack.c.l.b16 %v359
        %v1034 = vunpack.c.h.b16 %v359
        %v1035 = vunpack.c.l.b16 %v360
        %v1036 = vunpack.c.h.b16 %v360
        %v1037 = vunpack.c.l.b16 %v361
        %v1038 = vunpack.c.h.b16 %v361
        %v1039 = vunpack.c.l.b16 %v362
        %v1040 = vunpack.c.h.b16 %v362
        %v1041 = vunpack.c.l.b16 %v363
        %v1042 = vunpack.c.h.b16 %v363
        %v1043 = vunpack.c.l.b16 %v364
        %v1044 = vunpack.c.h.b16 %v364
        %v1045 = vunpack.c.l.b16 %v365
        %v1046 = vunpack.c.h.b16 %v365
        %v1047 = vunpack.c.l.b16 %v366
        %v1048 = vunpack.c.h.b16 %v366
        %v1049 = vunpack.c.l.b16 %v367
        %v1050 = vunpack.c.h.b16 %v367
        %v1051 = vunpack.c.l.b16 %v368
        %v1052 = vunpack.c.h.b16 %v368
        %v1053 = vunpack.c.l.b16 %v369
        %v1054 = vunpack.c.h.b16 %v369
        %v1055 = vunpack.c.l.b16 %v370
        %v1056 = vunpack.c.h.b16 %v370
        %v1057 = vunpack.c.l.b16 %v371
        %v1058 = vunpack.c.h.b16 %v371
        %v1059 = vunpack.c.l.b16 %v372
        %v1060 = vunpack.c.h.b16 %v372
        %v1061 = vunpack.c.l.b16 %v373
        %v1062 = vunpack.c.h.b16 %v373
        %v1063 = vunpack.c.l.b16 %v374
        %v1064 = vunpack.c.h.b16 %v374
        %v1065 = vunpack.c.l.b16 %v375
        %v1066 = vunpack.c.h.b16 %v375
        %v1067 = vunpack.c.l.b16 %v376
        %v1068 = vunpack.c.h.b16 %v376
        %v1069 = vunpack.c.l.b16 %v377
        %v1070 = vunpack.c.h.b16 %v377
        %v1071 = vunpack.c.l.b16 %v378
        %v1072 = vunpack.c.h.b16 %v378
        %v1073 = vunpack.c.l.b16 %v379
        %v1074 = vunpack.c.h.b16 %v379
        %v1075 = vunpack.c.l.b16 %v380
        %v1076 = vunpack.c.h.b16 %v380
        %v1077 = vunpack.c.l.b16 %v381
        %v1078 = vunpack.c.h.b16 %v381
        %v1079 = vunpack.c.l.b16 %v382
        %v1080 = vunpack.c.h.b16 %v382
        %v1081 = vunpack.c.l.b16 %v383
        %v1082 = vunpack.c.h.b16 %v383
        %v1083 = vunpack.c.l.b16 %v384
        %v1084 = vunpack.c.h.b16 %v384
        %v1085 = vunpack.c.l.b16 %v385
        %v1086 = vunpack.c.h.b16 %v385
        %v1087 = vunpack.c.l.b16 %v386
        %v1088 = vunpack.c.h.b16 %v386
        %v1089 = vunpack.c.l.b16 %v387
        %v1090 = vunpack.c.h.b16 %v387
        %v1091 = vunpack.c.l.b16 %v388
        %v1092 = vunpack.c.h.b16 %v388
        %v1093 = vunpack.c.l.b16 %v389
        %v1094 = vunpack.c.h.b16 %v389
        %v1095 = vunpack.c.l.b16 %v390
        %v1096 = vunpack.c.h.b16 %v390
        %v1097 = vunpack.c.l.b16 %v391
        %v1098 = vunpack.c.h.b16 %v391
        %v1099 = vunpack.c.l.b16 %v392
        %v1100 = vunpack.c.h.b16 %v392
        %v1101 = vunpack.c.l.b16 %v393
        %v1102 = vunpack.c.h.b16 %v393
        %v1103 = vunpack.c.l.b16 %v394
        %v1104 = vunpack.c.h.b16 %v394
        %v1105 = vunpack.c.l.b16 %v395
        %v1106 = vunpack.c.h.b16 %v395
        %v1107 = vunpack.c.l.b16 %v396
        %v1108 = vunpack.c.h.b16 %v396
        %v1109 = vunpack.c.l.b16 %v397
        %v1110 = vunpack.c.h.b16 %v397
        %v1111 = vunpack.c.l.b16 %v398
        %v1112 = vunpack.c.h.b16 %v398
        %v1113 = vunpack.c.l.b16 %v399
        %v1114 = vunpack.c.h.b16 %v399
        %v1115 = vunpack.c.l.b16 %v400
        %v1116 = vunpack.c.h.b16 %v400
        %v1117 = vunpack.c.l.b16 %v401
        %v1118 = vunpack.c.h.b16 %v401
        %v1119 = vunpack.c.l.b16 %v402
        %v1120 = vunpack.c.h.b16 %v402
        %v1121 = vunpack.c.l.b16 %v403
        %v1122 = vunpack.c.h.b16 %v403
        %v1123 = vunpack.c.l.b16 %v404
        %v1124 = vunpack.c.h.b16 %v404
        %v1125 = vunpack.c.l.b16 %v405
        %v1126 = vunpack.c.h.b16 %v405
        %v1127 = vunpack.c.l.b16 %v406
        %v1128 = vunpack.c.h.b16 %v406
        %v1129 = vunpack.c.l.b16 %v407
        %v1130 = vunpack.c.h.b16 %v407
        %v1131 = vunpack.c.l.b16 %v408
        %v1132 = vunpack.c.h.b16 %v408
        %v1133 = vunpack.c.l.b16 %v409
        %v1134 = vunpack.c.h.b16 %v409
        %v1135 = vunpack.c.l.b16 %v410
        %v1136 = vunpack.c.h.b16 %v410
        %v1137 = vunpack.c.l.b16 %v411
        %v1138 = vunpack.c.h.b16 %v411
        %v1139 = vunpack.c.l.b16 %v412
        %v1140 = vunpack.c.h.b16 %v412
        %v1141 = vunpack.c.l.b16 %v413
        %v1142 = vunpack.c.h.b16 %v413
        %v1143 = vunpack.c.l.b16 %v414
        %v1144 = vunpack.c.h.b16 %v414
        %v1145 = vunpack.c.l.b16 %v415
        %v1146 = vunpack.c.h.b16 %v415
        %v1147 = vunpack.c.l.b16 %v416
        %v1148 = vunpack.c.h.b16 %v416
        %v1149 = vunpack.c.l.b16 %v417
        %v1150 = vunpack.c.h.b16 %v417
        %v1151 = vunpack.c.l.b16 %v418
        %v1152 = vunpack.c.h.b16 %v418
        %v1153 = vunpack.c.l.b16 %v419
        %v1154 = vunpack.c.h.b16 %v419
        %v1155 = vunpack.c.l.b16 %v420
        %v1156 = vunpack.c.h.b16 %v420
        %v1157 = vunpack.c.l.b16 %v421
        %v1158 = vunpack.c.h.b16 %v421
        %v1159 = vunpack.c.l.b16 %v422
        %v1160 = vunpack.c.h.b16 %v422
        %v1161 = vunpack.c.l.b16 %v423
        %v1162 = vunpack.c.h.b16 %v423
        %v1163 = vunpack.c.l.b16 %v424
        %v1164 = vunpack.c.h.b16 %v424
        %v1165 = vunpack.c.l.b16 %v425
        %v1166 = vunpack.c.h.b16 %v425
        %v1167 = vunpack.c.l.b16 %v426
        %v1168 = vunpack.c.h.b16 %v426
        %v1169 = vunpack.c.l.b16 %v427
        %v1170 = vunpack.c.h.b16 %v427
        %v1171 = vunpack.c.l.b16 %v428
        %v1172 = vunpack.c.h.b16 %v428
        %v1173 = vunpack.c.l.b16 %v429
        %v1174 = vunpack.c.h.b16 %v429
        %v1175 = vunpack.c.l.b16 %v430
        %v1176 = vunpack.c.h.b16 %v430
        %v1177 = vunpack.c.l.b16 %v431
        %v1178 = vunpack.c.h.b16 %v431
        %v1179 = vunpack.c.l.b16 %v432
        %v1180 = vunpack.c.h.b16 %v432
        %v1181 = vunpack.c.l.b16 %v433
        %v1182 = vunpack.c.h.b16 %v433
        %v1183 = vunpack.c.l.b16 %v434
        %v1184 = vunpack.c.h.b16 %v434
        %v1185 = vunpack.c.l.b16 %v435
        %v1186 = vunpack.c.h.b16 %v435
        %v1187 = vunpack.c.l.b16 %v436
        %v1188 = vunpack.c.h.b16 %v436
        %v1189 = vunpack.c.l.b16 %v437
        %v1190 = vunpack.c.h.b16 %v437
        %v1191 = vunpack.c.l.b16 %v438
        %v1192 = vunpack.c.h.b16 %v438
        %v1193 = vunpack.c.l.b16 %v439
        %v1194 = vunpack.c.h.b16 %v439
        %v1195 = vunpack.c.l.b16 %v440
        %v1196 = vunpack.c.h.b16 %v440
        %v1197 = vunpack.c.l.b16 %v441
        %v1198 = vunpack.c.h.b16 %v441
        %v1199 = vunpack.c.l.b16 %v442
        %v1200 = vunpack.c.h.b16 %v442
        %v1201 = vunpack.c.l.b16 %v443
        %v1202 = vunpack.c.h.b16 %v443
        %v1203 = vunpack.c.l.b16 %v444
        %v1204 = vunpack.c.h.b16 %v444
        %v1205 = vunpack.c.l.b16 %v445
        %v1206 = vunpack.c.h.b16 %v445
        %v1207 = vunpack.c.l.b16 %v446
        %v1208 = vunpack.c.h.b16 %v446
        %v1209 = vunpack.c.l.b16 %v447
        %v1210 = vunpack.c.h.b16 %v447
        %v1211 = vunpack.c.l.b16 %v448
        %v1212 = vunpack.c.h.b16 %v448
        %v1213 = vunpack.c.l.b16 %v449
        %v1214 = vunpack.c.h.b16 %v449
        %v1215 = vunpack.c.l.b16 %v450
        %v1216 = vunpack.c.h.b16 %v450
        %v1217 = vunpack.c.l.b16 %v451
        %v1218 = vunpack.c.h.b16 %v451
        %v1219 = vunpack.c.l.b16 %v452
        %v1220 = vunpack.c.h.b16 %v452
        %v1221 = vunpack.c.l.b16 %v453
        %v1222 = vunpack.c.h.b16 %v453
        %v1223 = vunpack.c.l.b16 %v454
        %v1224 = vunpack.c.h.b16 %v454
        %v1225 = vunpack.c.l.b16 %v455
        %v1226 = vunpack.c.h.b16 %v455
        %v1227 = vunpack.c.l.b16 %v456
        %v1228 = vunpack.c.h.b16 %v456
        %v1229 = vunpack.c.l.b16 %v457
        %v1230 = vunpack.c.h.b16 %v457
        %v1231 = vunpack.c.l.b16 %v458
        %v1232 = vunpack.c.h.b16 %v458
        %v1233 = vunpack.c.l.b16 %v459
        %v1234 = vunpack.c.h.b16 %v459
        %v1235 = vunpack.c.l.b16 %v460
        %v1236 = vunpack.c.h.b16 %v460
        %v1237 = vunpack.c.l.b16 %v461
        %v1238 = vunpack.c.h.b16 %v461
        %v1239 = vunpack.c.l.b16 %v462
        %v1240 = vunpack.c.h.b16 %v462
        %v1241 = vunpack.c.l.b16 %v463
        %v1242 = vunpack.c.h.b16 %v463
        %v1243 = vunpack.c.l.b16 %v464
        %v1244 = vunpack.c.h.b16 %v464
        %v1245 = vunpack.c.l.b16 %v465
        %v1246 = vunpack.c.h.b16 %v465
        %v1247 = vunpack.c.l.b16 %v466
        %v1248 = vunpack.c.h.b16 %v466
        %v1249 = vunpack.c.l.b16 %v467
        %v1250 = vunpack.c.h.b16 %v467
        %v1251 = vunpack.c.l.b16 %v468
        %v1252 = vunpack.c.h.b16 %v468
        %v1253 = vunpack.c.l.b16 %v469
        %v1254 = vunpack.c.h.b16 %v469
        %v1255 = vunpack.c.l.b16 %v470
        %v1256 = vunpack.c.h.b16 %v470
        %v1257 = vunpack.c.l.b16 %v471
        %v1258 = vunpack.c.h.b16 %v471
        %v1259 = vunpack.c.l.b16 %v472
        %v1260 = vunpack.c.h.b16 %v472
        %v1261 = vunpack.c.l.b16 %v473
        %v1262 = vunpack.c.h.b16 %v473
        %v1263 = vunpack.c.l.b16 %v474
        %v1264 = vunpack.c.h.b16 %v474
        %v1265 = vunpack.c.l.b16 %v475
        %v1266 = vunpack.c.h.b16 %v475
        %v1267 = vunpack.c.l.b16 %v476
        %v1268 = vunpack.c.h.b16 %v476
        %v1269 = vunpack.c.l.b16 %v477
        %v1270 = vunpack.c.h.b16 %v477
        %v1271 = vunpack.c.l.b16 %v478
        %v1272 = vunpack.c.h.b16 %v478
        %v1273 = vunpack.c.l.b16 %v479
        %v1274 = vunpack.c.h.b16 %v479
        %v1275 = vunpack.c.l.b16 %v480
        %v1276 = vunpack.c.h.b16 %v480
        %v1277 = vunpack.c.l.b16 %v481
        %v1278 = vunpack.c.h.b16 %v481
        %v1279 = vunpack.c.l.b16 %v482
        %v1280 = vunpack.c.h.b16 %v482
        %v1281 = vunpack.c.l.b16 %v483
        %v1282 = vunpack.c.h.b16 %v483
        %v1283 = vunpack.c.l.b16 %v484
        %v1284 = vunpack.c.h.b16 %v484
        %v1285 = vunpack.c.l.b16 %v485
        %v1286 = vunpack.c.h.b16 %v485
        %v1287 = vunpack.c.l.b16 %v486
        %v1288 = vunpack.c.h.b16 %v486
        %v1289 = vunpack.c.l.b16 %v487
        %v1290 = vunpack.c.h.b16 %v487
        %v1291 = vunpack.c.l.b16 %v488
        %v1292 = vunpack.c.h.b16 %v488
        %v1293 = vunpack.c.l.b16 %v489
        %v1294 = vunpack.c.h.b16 %v489
        %v1295 = vunpack.c.l.b16 %v490
        %v1296 = vunpack.c.h.b16 %v490
        %v1297 = vunpack.c.l.b16 %v491
        %v1298 = vunpack.c.h.b16 %v491
        %v1299 = vunpack.c.l.b16 %v492
        %v1300 = vunpack.c.h.b16 %v492
        %v1301 = vunpack.c.l.b16 %v493
        %v1302 = vunpack.c.h.b16 %v493
        %v1303 = vunpack.c.l.b16 %v494
        %v1304 = vunpack.c.h.b16 %v494
        %v1305 = vunpack.c.l.b16 %v495
        %v1306 = vunpack.c.h.b16 %v495
        %v1307 = vunpack.c.l.b16 %v496
        %v1308 = vunpack.c.h.b16 %v496
        %v1309 = vunpack.c.l.b16 %v497
        %v1310 = vunpack.c.h.b16 %v497
        %v1311 = vunpack.c.l.b16 %v498
        %v1312 = vunpack.c.h.b16 %v498
        %v1313 = vunpack.c.l.b16 %v499
        %v1314 = vunpack.c.h.b16 %v499
        %v1315 = vunpack.c.l.b16 %v500
        %v1316 = vunpack.c.h.b16 %v500
        %v1317 = vunpack.c.l.b16 %v501
        %v1318 = vunpack.c.h.b16 %v501
        %v1319 = vunpack.c.l.b16 %v502
        %v1320 = vunpack.c.h.b16 %v502
        %v1321 = vunpack.c.l.b16 %v503
        %v1322 = vunpack.c.h.b16 %v503
        %v1323 = vunpack.c.l.b16 %v504
        %v1324 = vunpack.c.h.b16 %v504
        %v1325 = vunpack.c.l.b16 %v505
        %v1326 = vunpack.c.h.b16 %v505
        %v1327 = vunpack.c.l.b16 %v506
        %v1328 = vunpack.c.h.b16 %v506
        %v1329 = vunpack.c.l.b16 %v507
        %v1330 = vunpack.c.h.b16 %v507
        %v1331 = vunpack.c.l.b16 %v508
        %v1332 = vunpack.c.h.b16 %v508
        %v1333 = vunpack.c.l.b16 %v509
        %v1334 = vunpack.c.h.b16 %v509
        %v1335 = vunpack.c.l.b16 %v510
        %v1336 = vunpack.c.h.b16 %v510
        %v1337 = vunpack.c.l.b16 %v511
        %v1338 = vunpack.c.h.b16 %v511
        %v1339 = vunpack.c.l.b16 %v512
        %v1340 = vunpack.c.h.b16 %v512
        %v1341 = vunpack.c.l.b16 %v513
        %v1342 = vunpack.c.h.b16 %v513
        %v1343 = vunpack.c.l.b16 %v514
        %v1344 = vunpack.c.h.b16 %v514
        %v1345 = vunpack.c.l.b16 %v515
        %v1346 = vunpack.c.h.b16 %v515
        %v1347 = vunpack.c.l.b16 %v516
        %v1348 = vunpack.c.h.b16 %v516
        %v1349 = vunpack.c.l.b16 %v517
        %v1350 = vunpack.c.h.b16 %v517
        %v1351 = vunpack.c.l.b16 %v518
        %v1352 = vunpack.c.h.b16 %v518
        %v1353 = vunpack.c.l.b16 %v519
        %v1354 = vunpack.c.h.b16 %v519
        %v1355 = vunpack.c.l.b16 %v520
        %v1356 = vunpack.c.h.b16 %v520
        %v1357 = vunpack.c.l.b16 %v521
        %v1358 = vunpack.c.h.b16 %v521
        %v1359 = vunpack.c.l.b16 %v522
        %v1360 = vunpack.c.h.b16 %v522
        %v1361 = vunpack.c.l.b16 %v523
        %v1362 = vunpack.c.h.b16 %v523
        %v1363 = vunpack.c.l.b16 %v524
        %v1364 = vunpack.c.h.b16 %v524
        %v1365 = vunpack.c.l.b16 %v525
        %v1366 = vunpack.c.h.b16 %v525
        %v1367 = vunpack.c.l.b16 %v526
        %v1368 = vunpack.c.h.b16 %v526
        %v1369 = vunpack.c.l.b16 %v527
        %v1370 = vunpack.c.h.b16 %v527
        %v1371 = vunpack.c.l.b16 %v528
        %v1372 = vunpack.c.h.b16 %v528
        %v1373 = vunpack.c.l.b16 %v529
        %v1374 = vunpack.c.h.b16 %v529
        %v1375 = vunpack.c.l.b16 %v530
        %v1376 = vunpack.c.h.b16 %v530
        %v1377 = vunpack.c.l.b16 %v531
        %v1378 = vunpack.c.h.b16 %v531
        %v1379 = vunpack.c.l.b16 %v532
        %v1380 = vunpack.c.h.b16 %v532
        %v1381 = vunpack.c.l.b16 %v533
        %v1382 = vunpack.c.h.b16 %v533
        %v1383 = vunpack.c.l.b16 %v534
        %v1384 = vunpack.c.h.b16 %v534
        %v1385 = vunpack.c.l.b16 %v535
        %v1386 = vunpack.c.h.b16 %v535
        %v1387 = vunpack.c.l.b16 %v536
        %v1388 = vunpack.c.h.b16 %v536
        %v1389 = vunpack.c.l.b16 %v537
        %v1390 = vunpack.c.h.b16 %v537
        %v1391 = vunpack.c.l.b16 %v538
        %v1392 = vunpack.c.h.b16 %v538
        %v1393 = vunpack.c.l.b16 %v539
        %v1394 = vunpack.c.h.b16 %v539
        %v1395 = vunpack.c.l.b16 %v540
        %v1396 = vunpack.c.h.b16 %v540
        %v1397 = vunpack.c.l.b16 %v541
        %v1398 = vunpack.c.h.b16 %v541
        %v1399 = vunpack.c.l.b16 %v542
        %v1400 = vunpack.c.h.b16 %v542
        %v1401 = vunpack.c.l.b16 %v543
        %v1402 = vunpack.c.h.b16 %v543
        %v1403 = vunpack.c.l.b16 %v544
        %v1404 = vunpack.c.h.b16 %v544
        %v1405 = vunpack.c.l.b16 %v545
        %v1406 = vunpack.c.h.b16 %v545
        %v1407 = vunpack.c.l.b16 %v546
        %v1408 = vunpack.c.h.b16 %v546
        %v1409 = vunpack.c.l.b16 %v547
        %v1410 = vunpack.c.h.b16 %v547
        %v1411 = vunpack.c.l.b16 %v548
        %v1412 = vunpack.c.h.b16 %v548
        %v1413 = vunpack.c.l.b16 %v549
        %v1414 = vunpack.c.h.b16 %v549
        %v1415 = vunpack.c.l.b16 %v550
        %v1416 = vunpack.c.h.b16 %v550
        %v1417 = vunpack.c.l.b16 %v551
        %v1418 = vunpack.c.h.b16 %v551
        %v1419 = vunpack.c.l.b16 %v552
        %v1420 = vunpack.c.h.b16 %v552
        %v1421 = vunpack.c.l.b16 %v553
        %v1422 = vunpack.c.h.b16 %v553
        %v1423 = vunpack.c.l.b16 %v554
        %v1424 = vunpack.c.h.b16 %v554
        %v1425 = vunpack.c.l.b16 %v555
        %v1426 = vunpack.c.h.b16 %v555
        %v1427 = vunpack.c.l.b16 %v556
        %v1428 = vunpack.c.h.b16 %v556
        %v1429 = vunpack.c.l.b16 %v557
        %v1430 = vunpack.c.h.b16 %v557
        %v1431 = vunpack.c.l.b16 %v558
        %v1432 = vunpack.c.h.b16 %v558
        %v1433 = vunpack.c.l.b16 %v559
        %v1434 = vunpack.c.h.b16 %v559
        %v1435 = vunpack.c.l.b16 %v560
        %v1436 = vunpack.c.h.b16 %v560
        %v1437 = vunpack.c.l.b16 %v561
        %v1438 = vunpack.c.h.b16 %v561
        %v1439 = vunpack.c.l.b16 %v562
        %v1440 = vunpack.c.h.b16 %v562
        %v1441 = vpack.c.b16 %v871, %v865
        %v1442 = vpack.c.b16 %v872, %v866
        %v1443 = vpack.c.b16 %v873, %v867
        %v1444 = vpack.c.b16 %v874, %v868
        %v1445 = vpack.c.b16 %v875, %v869
        %v1446 = vpack.c.b16 %v876, %v870
        %v1447 = vpack.c.b16 %v883, %v877
        %v1448 = vpack.c.b16 %v884, %v878
        %v1449 = vpack.c.b16 %v885, %v879
        %v1450 = vpack.c.b16 %v886, %v880
        %v1451 = vpack.c.b16 %v887, %v881
        %v1452 = vpack.c.b16 %v888, %v882
        %v1453 = vpack.c.b16 %v895, %v889
        %v1454 = vpack.c.b16 %v896, %v890
        %v1455 = vpack.c.b16 %v897, %v891
        %v1456 = vpack.c.b16 %v898, %v892
        %v1457 = vpack.c.b16 %v899, %v893
        %v1458 = vpack.c.b16 %v900, %v894
        %v1459 = vpack.c.b16 %v907, %v901
        %v1460 = vpack.c.b16 %v908, %v902
        %v1461 = vpack.c.b16 %v909, %v903
        %v1462 = vpack.c.b16 %v910, %v904
        %v1463 = vpack.c.b16 %v911, %v905
        %v1464 = vpack.c.b16 %v912, %v906
        %v1465 = vpack.c.b16 %v919, %v913
        %v1466 = vpack.c.b16 %v920, %v914
        %v1467 = vpack.c.b16 %v921, %v915
        %v1468 = vpack.c.b16 %v922, %v916
        %v1469 = vpack.c.b16 %v923, %v917
        %v1470 = vpack.c.b16 %v924, %v918
        %v1471 = vpack.c.b16 %v931, %v925
        %v1472 = vpack.c.b16 %v932, %v926
        %v1473 = vpack.c.b16 %v933, %v927
        %v1474 = vpack.c.b16 %v934, %v928
        %v1475 = vpack.c.b16 %v935, %v929
        %v1476 = vpack.c.b16 %v936, %v930
        %v1477 = vpack.c.b16 %v943, %v937
        %v1478 = vpack.c.b16 %v944, %v938
        %v1479 = vpack.c.b16 %v945, %v939
        %v1480 = vpack.c.b16 %v946, %v940
        %v1481 = vpack.c.b16 %v947, %v941
        %v1482 = vpack.c.b16 %v948, %v942
        %v1483 = vpack.c.b16 %v955, %v949
        %v1484 = vpack.c.b16 %v956, %v950
        %v1485 = vpack.c.b16 %v957, %v951
        %v1486 = vpack.c.b16 %v958, %v952
        %v1487 = vpack.c.b16 %v959, %v953
        %v1488 = vpack.c.b16 %v960, %v954
        %v1489 = vpack.c.b16 %v967, %v961
        %v1490 = vpack.c.b16 %v968, %v962
        %v1491 = vpack.c.b16 %v969, %v963
        %v1492 = vpack.c.b16 %v970, %v964
        %v1493 = vpack.c.b16 %v971, %v965
        %v1494 = vpack.c.b16 %v972, %v966
        %v1495 = vpack.c.b16 %v979, %v973
        %v1496 = vpack.c.b16 %v980, %v974
        %v1497 = vpack.c.b16 %v981, %v975
        %v1498 = vpack.c.b16 %v982, %v976
        %v1499 = vpack.c.b16 %v983, %v977
        %v1500 = vpack.c.b16 %v984, %v978
        %v1501 = vpack.c.b16 %v991, %v985
        %v1502 = vpack.c.b16 %v992, %v986
        %v1503 = vpack.c.b16 %v993, %v987
        %v1504 = vpack.c.b16 %v994, %v988
        %v1505 = vpack.c.b16 %v995, %v989
        %v1506 = vpack.c.b16 %v996, %v990
        %v1507 = vpack.c.b16 %v1003, %v997
        %v1508 = vpack.c.b16 %v1004, %v998
        %v1509 = vpack.c.b16 %v1005, %v999
        %v1510 = vpack.c.b16 %v1006, %v1000
        %v1511 = vpack.c.b16 %v1007, %v1001
        %v1512 = vpack.c.b16 %v1008, %v1002
        %v1513 = vpack.c.b16 %v1015, %v1009
        %v1514 = vpack.c.b16 %v1016, %v1010
        %v1515 = vpack.c.b16 %v1017, %v1011
        %v1516 = vpack.c.b16 %v1018, %v1012
        %v1517 = vpack.c.b16 %v1019, %v1013
        %v1518 = vpack.c.b16 %v1020, %v1014
        %v1519 = vpack.c.b16 %v1027, %v1021
        %v1520 = vpack.c.b16 %v1028, %v1022
        %v1521 = vpack.c.b16 %v1029, %v1023
        %v1522 = vpack.c.b16 %v1030, %v1024
        %v1523 = vpack.c.b16 %v1031, %v1025
        %v1524 = vpack.c.b16 %v1032, %v1026
        %v1525 = vpack.c.b16 %v1039, %v1033
        %v1526 = vpack.c.b16 %v1040, %v1034
        %v1527 = vpack.c.b16 %v1041, %v1035
        %v1528 = vpack.c.b16 %v1042, %v1036
        %v1529 = vpack.c.b16 %v1043, %v1037
        %v1530 = vpack.c.b16 %v1044, %v1038
        %v1531 = vpack.c.b16 %v1051, %v1045
        %v1532 = vpack.c.b16 %v1052, %v1046
        %v1533 = vpack.c.b16 %v1053, %v1047
        %v1534 = vpack.c.b16 %v1054, %v1048
        %v1535 = vpack.c.b16 %v1055, %v1049
        %v1536 = vpack.c.b16 %v1056, %v1050
        %v1537 = vpack.c.b16 %v1063, %v1057
        %v1538 = vpack.c.b16 %v1064, %v1058
        %v1539 = vpack.c.b16 %v1065, %v1059
        %v1540 = vpack.c.b16 %v1066, %v1060
        %v1541 = vpack.c.b16 %v1067, %v1061
        %v1542 = vpack.c.b16 %v1068, %v1062
        %v1543 = vpack.c.b16 %v1075, %v1069
        %v1544 = vpack.c.b16 %v1076, %v1070
        %v1545 = vpack.c.b16 %v1077, %v1071
        %v1546 = vpack.c.b16 %v1078, %v1072
        %v1547 = vpack.c.b16 %v1079, %v1073
        %v1548 = vpack.c.b16 %v1080, %v1074
        %v1549 = vpack.c.b16 %v1087, %v1081
        %v1550 = vpack.c.b16 %v1088, %v1082
        %v1551 = vpack.c.b16 %v1089, %v1083
        %v1552 = vpack.c.b16 %v1090, %v1084
        %v1553 = vpack.c.b16 %v1091, %v1085
        %v1554 = vpack.c.b16 %v1092, %v1086
        %v1555 = vpack.c.b16 %v1099, %v1093
        %v1556 = vpack.c.b16 %v1100, %v1094
        %v1557 = vpack.c.b16 %v1101, %v1095
        %v1558 = vpack.c.b16 %v1102, %v1096
        %v1559 = vpack.c.b16 %v1103, %v1097
        %v1560 = vpack.c.b16 %v1104, %v1098
        %v1561 = vpack.c.b16 %v1111, %v1105
        %v1562 = vpack.c.b16 %v1112, %v1106
        %v1563 = vpack.c.b16 %v1113, %v1107
        %v1564 = vpack.c.b16 %v1114, %v1108
        %v1565 = vpack.c.b16 %v1115, %v1109
        %v1566 = vpack.c.b16 %v1116, %v1110
        %v1567 = vpack.c.b16 %v1123, %v1117
        %v1568 = vpack.c.b16 %v1124, %v1118
        %v1569 = vpack.c.b16 %v1125, %v1119
        %v1570 = vpack.c.b16 %v1126, %v1120
        %v1571 = vpack.c.b16 %v1127, %v1121
        %v1572 = vpack.c.b16 %v1128, %v1122
        %v1573 = vpack.c.b16 %v1135, %v1129
        %v1574 = vpack.c.b16 %v1136, %v1130
        %v1575 = vpack.c.b16 %v1137, %v1131
        %v1576 = vpack.c.b16 %v1138, %v1132
        %v1577 = vpack.c.b16 %v1139, %v1133
        %v1578 = vpack.c.b16 %v1140, %v1134
        %v1579 = vpack.c.b16 %v1147, %v1141
        %v1580 = vpack.c.b16 %v1148, %v1142
        %v1581 = vpack.c.b16 %v1149, %v1143
        %v1582 = vpack.c.b16 %v1150, %v1144
        %v1583 = vpack.c.b16 %v1151, %v1145
        %v1584 = vpack.c.b16 %v1152, %v1146
        %v1585 = vpack.c.b16 %v1159, %v1153
        %v1586 = vpack.c.b16 %v1160, %v1154
        %v1587 = vpack.c.b16 %v1161, %v1155
        %v1588 = vpack.c.b16 %v1162, %v1156
        %v1589 = vpack.c.b16 %v1163, %v1157
        %v1590 = vpack.c.b16 %v1164, %v1158
        %v1591 = vpack.c.b16 %v1171, %v1165
        %v1592 = vpack.c.b16 %v1172, %v1166
        %v1593 = vpack.c.b16 %v1173, %v1167
        %v1594 = vpack.c.b16 %v1174, %v1168
        %v1595 = vpack.c.b16 %v1175, %v1169
        %v1596 = vpack.c.b16 %v1176, %v1170
        %v1597 = vpack.c.b16 %v1183, %v1177
        %v1598 = vpack.c.b16 %v1184, %v1178
        %v1599 = vpack.c.b16 %v1185, %v1179
        %v1600 = vpack.c.b16 %v1186, %v1180
        %v1601 = vpack.c.b16 %v1187, %v1181
        %v1602 = vpack.c.b16 %v1188, %v1182
        %v1603 = vpack.c.b16 %v1195, %v1189
        %v1604 = vpack.c.b16 %v1196, %v1190
        %v1605 = vpack.c.b16 %v1197, %v1191
        %v1606 = vpack.c.b16 %v1198, %v1192
        %v1607 = vpack.c.b16 %v1199, %v1193
        %v1608 = vpack.c.b16 %v1200, %v1194
        %v1609 = vpack.c.b16 %v1207, %v1201
        %v1610 = vpack.c.b16 %v1208, %v1202
        %v1611 = vpack.c.b16 %v1209, %v1203
        %v1612 = vpack.c.b16 %v1210, %v1204
        %v1613 = vpack.c.b16 %v1211, %v1205
        %v1614 = vpack.c.b16 %v1212, %v1206
        %v1615 = vpack.c.b16 %v1219, %v1213
        %v1616 = vpack.c.b16 %v1220, %v1214
        %v1617 = vpack.c.b16 %v1221, %v1215
        %v1618 = vpack.c.b16 %v1222, %v1216
        %v1619 = vpack.c.b16 %v1223, %v1217
        %v1620 = vpack.c.b16 %v1224, %v1218
        %v1621 = vpack.c.b16 %v1231, %v1225
        %v1622 = vpack.c.b16 %v1232, %v1226
        %v1623 = vpack.c.b16 %v1233, %v1227
        %v1624 = vpack.c.b16 %v1234, %v1228
        %v1625 = vpack.c.b16 %v1235, %v1229
        %v1626 = vpack.c.b16 %v1236, %v1230
        %v1627 = vpack.c.b16 %v1243, %v1237
        %v1628 = vpack.c.b16 %v1244, %v1238
        %v1629 = vpack.c.b16 %v1245, %v1239
        %v1630 = vpack.c.b16 %v1246, %v1240
        %v1631 = vpack.c.b16 %v1247, %v1241
        %v1632 = vpack.c.b16 %v1248, %v1242
        %v1633 = vpack.c.b16 %v1255, %v1249
        %v1634 = vpack.c.b16 %v1256, %v1250
        %v1635 = vpack.c.b16 %v1257, %v1251
        %v1636 = vpack.c.b16 %v1258, %v1252
        %v1637 = vpack.c.b16 %v1259, %v1253
        %v1638 = vpack.c.b16 %v1260, %v1254
        %v1639 = vpack.c.b16 %v1267, %v1261
        %v1640 = vpack.c.b16 %v1268, %v1262
        %v1641 = vpack.c.b16 %v1269, %v1263
        %v1642 = vpack.c.b16 %v1270, %v1264
        %v1643 = vpack.c.b16 %v1271, %v1265
        %v1644 = vpack.c.b16 %v1272, %v1266
        %v1645 = vpack.c.b16 %v1279, %v1273
        %v1646 = vpack.c.b16 %v1280, %v1274
        %v1647 = vpack.c.b16 %v1281, %v1275
        %v1648 = vpack.c.b16 %v1282, %v1276
        %v1649 = vpack.c.b16 %v1283, %v1277
        %v1650 = vpack.c.b16 %v1284, %v1278
        %v1651 = vpack.c.b16 %v1291, %v1285
        %v1652 = vpack.c.b16 %v1292, %v1286
        %v1653 = vpack.c.b16 %v1293, %v1287
        %v1654 = vpack.c.b16 %v1294, %v1288
        %v1655 = vpack.c.b16 %v1295, %v1289
        %v1656 = vpack.c.b16 %v1296, %v1290
        %v1657 = vpack.c.b16 %v1303, %v1297
        %v1658 = vpack.c.b16 %v1304, %v1298
        %v1659 = vpack.c.b16 %v1305, %v1299
        %v1660 = vpack.c.b16 %v1306, %v1300
        %v1661 = vpack.c.b16 %v1307, %v1301
        %v1662 = vpack.c.b16 %v1308, %v1302
        %v1663 = vpack.c.b16 %v1315, %v1309
        %v1664 = vpack.c.b16 %v1316, %v1310
        %v1665 = vpack.c.b16 %v1317, %v1311
        %v1666 = vpack.c.b16 %v1318, %v1312
        %v1667 = vpack.c.b16 %v1319, %v1313
        %v1668 = vpack.c.b16 %v1320, %v1314
        %v1669 = vpack.c.b16 %v1327, %v1321
        %v1670 = vpack.c.b16 %v1328, %v1322
        %v1671 = vpack.c.b16 %v1329, %v1323
        %v1672 = vpack.c.b16 %v1330, %v1324
        %v1673 = vpack.c.b16 %v1331, %v1325
        %v1674 = vpack.c.b16 %v1332, %v1326
        %v1675 = vpack.c.b16 %v1339, %v1333
        %v1676 = vpack.c.b16 %v1340, %v1334
        %v1677 = vpack.c.b16 %v1341, %v1335
        %v1678 = vpack.c.b16 %v1342, %v1336
        %v1679 = vpack.c.b16 %v1343, %v1337
        %v1680 = vpack.c.b16 %v1344, %v1338
        %v1681 = vpack.c.b16 %v1351, %v1345
        %v1682 = vpack.c.b16 %v1352, %v1346
        %v1683 = vpack.c.b16 %v1353, %v1347
        %v1684 = vpack.c.b16 %v1354, %v1348
        %v1685 = vpack.c.b16 %v1355, %v1349
        %v1686 = vpack.c.b16 %v1356, %v1350
        %v1687 = vpack.c.b16 %v1363, %v1357
        %v1688 = vpack.c.b16 %v1364, %v1358
        %v1689 = vpack.c.b16 %v1365, %v1359
        %v1690 = vpack.c.b16 %v1366, %v1360
        %v1691 = vpack.c.b16 %v1367, %v1361
        %v1692 = vpack.c.b16 %v1368, %v1362
        %v1693 = vpack.c.b16 %v1375, %v1369
        %v1694 = vpack.c.b16 %v1376, %v1370
        %v1695 = vpack.c.b16 %v1377, %v1371
        %v1696 = vpack.c.b16 %v1378, %v1372
        %v1697 = vpack.c.b16 %v1379, %v1373
        %v1698 = vpack.c.b16 %v1380, %v1374
        %v1699 = vpack.c.b16 %v1387, %v1381
        %v1700 = vpack.c.b16 %v1388, %v1382
        %v1701 = vpack.c.b16 %v1389, %v1383
        %v1702 = vpack.c.b16 %v1390, %v1384
        %v1703 = vpack.c.b16 %v1391, %v1385
        %v1704 = vpack.c.b16 %v1392, %v1386
        %v1705 = vpack.c.b16 %v1399, %v1393
        %v1706 = vpack.c.b16 %v1400, %v1394
        %v1707 = vpack.c.b16 %v1401, %v1395
        %v1708 = vpack.c.b16 %v1402, %v1396
        %v1709 = vpack.c.b16 %v1403, %v1397
        %v1710 = vpack.c.b16 %v1404, %v1398
        %v1711 = vpack.c.b16 %v1411, %v1405
        %v1712 = vpack.c.b16 %v1412, %v1406
        %v1713 = vpack.c.b16 %v1413, %v1407
        %v1714 = vpack.c.b16 %v1414, %v1408
        %v1715 = vpack.c.b16 %v1415, %v1409
        %v1716 = vpack.c.b16 %v1416, %v1410
        %v1717 = vpack.c.b16 %v1423, %v1417
        %v1718 = vpack.c.b16 %v1424, %v1418
        %v1719 = vpack.c.b16 %v1425, %v1419
        %v1720 = vpack.c.b16 %v1426, %v1420
        %v1721 = vpack.c.b16 %v1427, %v1421
        %v1722 = vpack.c.b16 %v1428, %v1422
        %v1723 = vpack.c.b16 %v1435, %v1429
        %v1724 = vpack.c.b16 %v1436, %v1430
        %v1725 = vpack.c.b16 %v1437, %v1431
        %v1726 = vpack.c.b16 %v1438, %v1432
        %v1727 = vpack.c.b16 %v1439, %v1433
        %v1728 = vpack.c.b16 %v1440, %v1434
        %2017 = vmatpush.bf16.msra.mxu0 %v1483
        %2018 = vmatpush.bf16.msra.mxu0 %v1477
        %2019 = vmatpush.bf16.msra.mxu0 %v1471
        %2020 = vmatpush.bf16.msra.mxu0 %v1465
        %2021 = vmatpush.bf16.msra.mxu0 %v1459
        %2022 = vmatpush.bf16.msra.mxu0 %v1453
        %2023 = vmatpush.bf16.msra.mxu0 %v1447
        %2024 = vmatpush.bf16.msra.mxu0 %v1441
        %2025 = vmatmul.bf16.gmra.mxu0 %v269
        %v2026 = vpop.f32.mrf.mxu0
        %v2027 = vadd.f32 %v565, %v2026
        %v2028 = vpop.f32.mrf.mxu0
        %v2029 = vadd.f32 %v565, %v2028
        %2030 = vdwg.mxu0
        %2031 = vmatpush.bf16.msra.mxu0 %v1531
        %2032 = vmatpush.bf16.msra.mxu0 %v1525
        %2033 = vmatpush.bf16.msra.mxu0 %v1519
        %2034 = vmatpush.bf16.msra.mxu0 %v1513
        %2035 = vmatpush.bf16.msra.mxu0 %v1507
        %2036 = vmatpush.bf16.msra.mxu0 %v1501
        %2037 = vmatpush.bf16.msra.mxu0 %v1495
        %2038 = vmatpush.bf16.msra.mxu0 %v1489
        %2039 = vmatmul.bf16.gmra.mxu0 %v270
        %v2040 = vpop.f32.mrf.mxu0
        %v2041 = vadd.f32 %v2027, %v2040
        %v2042 = vpop.f32.mrf.mxu0
        %v2043 = vadd.f32 %v2029, %v2042
        %2044 = vdwg.mxu0
        %2045 = vmatpush.bf16.msra.mxu0 %v1579
        %2046 = vmatpush.bf16.msra.mxu0 %v1573
        %2047 = vmatpush.bf16.msra.mxu0 %v1567
        %2048 = vmatpush.bf16.msra.mxu0 %v1561
        %2049 = vmatpush.bf16.msra.mxu0 %v1555
        %2050 = vmatpush.bf16.msra.mxu0 %v1549
        %2051 = vmatpush.bf16.msra.mxu0 %v1543
        %2052 = vmatpush.bf16.msra.mxu0 %v1537
        %2053 = vmatmul.bf16.gmra.mxu0 %v271
        %v2054 = vpop.f32.mrf.mxu0
        %v2055 = vadd.f32 %v2041, %v2054
        %v2056 = vpop.f32.mrf.mxu0
        %v2057 = vadd.f32 %v2043, %v2056
        %2058 = vdwg.mxu0
        %2059 = vmatpush.bf16.msra.mxu0 %v1627
        %2060 = vmatpush.bf16.msra.mxu0 %v1621
        %2061 = vmatpush.bf16.msra.mxu0 %v1615
        %2062 = vmatpush.bf16.msra.mxu0 %v1609
        %2063 = vmatpush.bf16.msra.mxu0 %v1603
        %2064 = vmatpush.bf16.msra.mxu0 %v1597
        %2065 = vmatpush.bf16.msra.mxu0 %v1591
        %2066 = vmatpush.bf16.msra.mxu0 %v1585
        %2067 = vmatmul.bf16.gmra.mxu0 %v272
        %v2068 = vpop.f32.mrf.mxu0
        %v2069 = vadd.f32 %v2055, %v2068
        %v2070 = vpop.f32.mrf.mxu0
        %v2071 = vadd.f32 %v2057, %v2070
        %2072 = vdwg.mxu0
        %2073 = vmatpush.bf16.msra.mxu0 %v1675
        %2074 = vmatpush.bf16.msra.mxu0 %v1669
        %2075 = vmatpush.bf16.msra.mxu0 %v1663
        %2076 = vmatpush.bf16.msra.mxu0 %v1657
        %2077 = vmatpush.bf16.msra.mxu0 %v1651
        %2078 = vmatpush.bf16.msra.mxu0 %v1645
        %2079 = vmatpush.bf16.msra.mxu0 %v1639
        %2080 = vmatpush.bf16.msra.mxu0 %v1633
        %2081 = vmatmul.bf16.gmra.mxu0 %v273
        %v2082 = vpop.f32.mrf.mxu0
        %v2083 = vadd.f32 %v2069, %v2082
        %v2084 = vpop.f32.mrf.mxu0
        %v2085 = vadd.f32 %v2071, %v2084
        %2086 = vdwg.mxu0
        %2087 = vmatpush.bf16.msra.mxu0 %v1723
        %2088 = vmatpush.bf16.msra.mxu0 %v1717
        %2089 = vmatpush.bf16.msra.mxu0 %v1711
        %2090 = vmatpush.bf16.msra.mxu0 %v1705
        %2091 = vmatpush.bf16.msra.mxu0 %v1699
        %2092 = vmatpush.bf16.msra.mxu0 %v1693
        %2093 = vmatpush.bf16.msra.mxu0 %v1687
        %2094 = vmatpush.bf16.msra.mxu0 %v1681
        %2095 = vmatmul.bf16.gmra.mxu0 %v274
        %v2096 = vpop.f32.mrf.mxu0
        %v2097 = vadd.f32 %v2083, %v2096
        %v2098 = vpop.f32.mrf.mxu0
        %v2099 = vadd.f32 %v2085, %v2098
        %2100 = vdwg.mxu0
        %2101 = vmatpush.bf16.msra.mxu0 %v1484
        %2102 = vmatpush.bf16.msra.mxu0 %v1478
        %2103 = vmatpush.bf16.msra.mxu0 %v1472
        %2104 = vmatpush.bf16.msra.mxu0 %v1466
        %2105 = vmatpush.bf16.msra.mxu0 %v1460
        %2106 = vmatpush.bf16.msra.mxu0 %v1454
        %2107 = vmatpush.bf16.msra.mxu0 %v1448
        %2108 = vmatpush.bf16.msra.mxu0 %v1442
        %2109 = vmatmul.bf16.gmra.mxu0 %v269
        %v2110 = vpop.f32.mrf.mxu0
        %v2111 = vadd.f32 %v566, %v2110
        %v2112 = vpop.f32.mrf.mxu0
        %v2113 = vadd.f32 %v566, %v2112
        %2114 = vdwg.mxu0
        %2115 = vmatpush.bf16.msra.mxu0 %v1532
        %2116 = vmatpush.bf16.msra.mxu0 %v1526
        %2117 = vmatpush.bf16.msra.mxu0 %v1520
        %2118 = vmatpush.bf16.msra.mxu0 %v1514
        %2119 = vmatpush.bf16.msra.mxu0 %v1508
        %2120 = vmatpush.bf16.msra.mxu0 %v1502
        %2121 = vmatpush.bf16.msra.mxu0 %v1496
        %2122 = vmatpush.bf16.msra.mxu0 %v1490
        %2123 = vmatmul.bf16.gmra.mxu0 %v270
        %v2124 = vpop.f32.mrf.mxu0
        %v2125 = vadd.f32 %v2111, %v2124
        %v2126 = vpop.f32.mrf.mxu0
        %v2127 = vadd.f32 %v2113, %v2126
        %2128 = vdwg.mxu0
        %2129 = vmatpush.bf16.msra.mxu0 %v1580
        %2130 = vmatpush.bf16.msra.mxu0 %v1574
        %2131 = vmatpush.bf16.msra.mxu0 %v1568
        %2132 = vmatpush.bf16.msra.mxu0 %v1562
        %2133 = vmatpush.bf16.msra.mxu0 %v1556
        %2134 = vmatpush.bf16.msra.mxu0 %v1550
        %2135 = vmatpush.bf16.msra.mxu0 %v1544
        %2136 = vmatpush.bf16.msra.mxu0 %v1538
        %2137 = vmatmul.bf16.gmra.mxu0 %v271
        %v2138 = vpop.f32.mrf.mxu0
        %v2139 = vadd.f32 %v2125, %v2138
        %v2140 = vpop.f32.mrf.mxu0
        %v2141 = vadd.f32 %v2127, %v2140
        %2142 = vdwg.mxu0
        %2143 = vmatpush.bf16.msra.mxu0 %v1628
        %2144 = vmatpush.bf16.msra.mxu0 %v1622
        %2145 = vmatpush.bf16.msra.mxu0 %v1616
        %2146 = vmatpush.bf16.msra.mxu0 %v1610
        %2147 = vmatpush.bf16.msra.mxu0 %v1604
        %2148 = vmatpush.bf16.msra.mxu0 %v1598
        %2149 = vmatpush.bf16.msra.mxu0 %v1592
        %2150 = vmatpush.bf16.msra.mxu0 %v1586
        %2151 = vmatmul.bf16.gmra.mxu0 %v272
        %v2152 = vpop.f32.mrf.mxu0
        %v2153 = vadd.f32 %v2139, %v2152
        %v2154 = vpop.f32.mrf.mxu0
        %v2155 = vadd.f32 %v2141, %v2154
        %2156 = vdwg.mxu0
        %2157 = vmatpush.bf16.msra.mxu0 %v1676
        %2158 = vmatpush.bf16.msra.mxu0 %v1670
        %2159 = vmatpush.bf16.msra.mxu0 %v1664
        %2160 = vmatpush.bf16.msra.mxu0 %v1658
        %2161 = vmatpush.bf16.msra.mxu0 %v1652
        %2162 = vmatpush.bf16.msra.mxu0 %v1646
        %2163 = vmatpush.bf16.msra.mxu0 %v1640
        %2164 = vmatpush.bf16.msra.mxu0 %v1634
        %2165 = vmatmul.bf16.gmra.mxu0 %v273
        %v2166 = vpop.f32.mrf.mxu0
        %v2167 = vadd.f32 %v2153, %v2166
        %v2168 = vpop.f32.mrf.mxu0
        %v2169 = vadd.f32 %v2155, %v2168
        %2170 = vdwg.mxu0
        %2171 = vmatpush.bf16.msra.mxu0 %v1724
        %2172 = vmatpush.bf16.msra.mxu0 %v1718
        %2173 = vmatpush.bf16.msra.mxu0 %v1712
        %2174 = vmatpush.bf16.msra.mxu0 %v1706
        %2175 = vmatpush.bf16.msra.mxu0 %v1700
        %2176 = vmatpush.bf16.msra.mxu0 %v1694
        %2177 = vmatpush.bf16.msra.mxu0 %v1688
        %2178 = vmatpush.bf16.msra.mxu0 %v1682
        %2179 = vmatmul.bf16.gmra.mxu0 %v274
        %v2180 = vpop.f32.mrf.mxu0
        %v2181 = vadd.f32 %v2167, %v2180
        %v2182 = vpop.f32.mrf.mxu0
        %v2183 = vadd.f32 %v2169, %v2182
        %2184 = vdwg.mxu0
        %2185 = vmatpush.bf16.msra.mxu0 %v1485
        %2186 = vmatpush.bf16.msra.mxu0 %v1479
        %2187 = vmatpush.bf16.msra.mxu0 %v1473
        %2188 = vmatpush.bf16.msra.mxu0 %v1467
        %2189 = vmatpush.bf16.msra.mxu0 %v1461
        %2190 = vmatpush.bf16.msra.mxu0 %v1455
        %2191 = vmatpush.bf16.msra.mxu0 %v1449
        %2192 = vmatpush.bf16.msra.mxu0 %v1443
        %2193 = vmatmul.bf16.gmra.mxu0 %v269
        %v2194 = vpop.f32.mrf.mxu0
        %v2195 = vadd.f32 %v567, %v2194
        %v2196 = vpop.f32.mrf.mxu0
        %v2197 = vadd.f32 %v567, %v2196
        %2198 = vdwg.mxu0
        %2199 = vmatpush.bf16.msra.mxu0 %v1533
        %2200 = vmatpush.bf16.msra.mxu0 %v1527
        %2201 = vmatpush.bf16.msra.mxu0 %v1521
        %2202 = vmatpush.bf16.msra.mxu0 %v1515
        %2203 = vmatpush.bf16.msra.mxu0 %v1509
        %2204 = vmatpush.bf16.msra.mxu0 %v1503
        %2205 = vmatpush.bf16.msra.mxu0 %v1497
        %2206 = vmatpush.bf16.msra.mxu0 %v1491
        %2207 = vmatmul.bf16.gmra.mxu0 %v270
        %v2208 = vpop.f32.mrf.mxu0
        %v2209 = vadd.f32 %v2195, %v2208
        %v2210 = vpop.f32.mrf.mxu0
        %v2211 = vadd.f32 %v2197, %v2210
        %2212 = vdwg.mxu0
        %2213 = vmatpush.bf16.msra.mxu0 %v1581
        %2214 = vmatpush.bf16.msra.mxu0 %v1575
        %2215 = vmatpush.bf16.msra.mxu0 %v1569
        %2216 = vmatpush.bf16.msra.mxu0 %v1563
        %2217 = vmatpush.bf16.msra.mxu0 %v1557
        %2218 = vmatpush.bf16.msra.mxu0 %v1551
        %2219 = vmatpush.bf16.msra.mxu0 %v1545
        %2220 = vmatpush.bf16.msra.mxu0 %v1539
        %2221 = vmatmul.bf16.gmra.mxu0 %v271
        %v2222 = vpop.f32.mrf.mxu0
        %v2223 = vadd.f32 %v2209, %v2222
        %v2224 = vpop.f32.mrf.mxu0
        %v2225 = vadd.f32 %v2211, %v2224
        %2226 = vdwg.mxu0
        %2227 = vmatpush.bf16.msra.mxu0 %v1629
        %2228 = vmatpush.bf16.msra.mxu0 %v1623
        %2229 = vmatpush.bf16.msra.mxu0 %v1617
        %2230 = vmatpush.bf16.msra.mxu0 %v1611
        %2231 = vmatpush.bf16.msra.mxu0 %v1605
        %2232 = vmatpush.bf16.msra.mxu0 %v1599
        %2233 = vmatpush.bf16.msra.mxu0 %v1593
        %2234 = vmatpush.bf16.msra.mxu0 %v1587
        %2235 = vmatmul.bf16.gmra.mxu0 %v272
        %v2236 = vpop.f32.mrf.mxu0
        %v2237 = vadd.f32 %v2223, %v2236
        %v2238 = vpop.f32.mrf.mxu0
        %v2239 = vadd.f32 %v2225, %v2238
        %2240 = vdwg.mxu0
        %2241 = vmatpush.bf16.msra.mxu0 %v1677
        %2242 = vmatpush.bf16.msra.mxu0 %v1671
        %2243 = vmatpush.bf16.msra.mxu0 %v1665
        %2244 = vmatpush.bf16.msra.mxu0 %v1659
        %2245 = vmatpush.bf16.msra.mxu0 %v1653
        %2246 = vmatpush.bf16.msra.mxu0 %v1647
        %2247 = vmatpush.bf16.msra.mxu0 %v1641
        %2248 = vmatpush.bf16.msra.mxu0 %v1635
        %2249 = vmatmul.bf16.gmra.mxu0 %v273
        %v2250 = vpop.f32.mrf.mxu0
        %v2251 = vadd.f32 %v2237, %v2250
        %v2252 = vpop.f32.mrf.mxu0
        %v2253 = vadd.f32 %v2239, %v2252
        %2254 = vdwg.mxu0
        %2255 = vmatpush.bf16.msra.mxu0 %v1725
        %2256 = vmatpush.bf16.msra.mxu0 %v1719
        %2257 = vmatpush.bf16.msra.mxu0 %v1713
        %2258 = vmatpush.bf16.msra.mxu0 %v1707
        %2259 = vmatpush.bf16.msra.mxu0 %v1701
        %2260 = vmatpush.bf16.msra.mxu0 %v1695
        %2261 = vmatpush.bf16.msra.mxu0 %v1689
        %2262 = vmatpush.bf16.msra.mxu0 %v1683
        %2263 = vmatmul.bf16.gmra.mxu0 %v274
        %v2264 = vpop.f32.mrf.mxu0
        %v2265 = vadd.f32 %v2251, %v2264
        %v2266 = vpop.f32.mrf.mxu0
        %v2267 = vadd.f32 %v2253, %v2266
        %2268 = vdwg.mxu0
        %2269 = vmatpush.bf16.msra.mxu0 %v1486
        %2270 = vmatpush.bf16.msra.mxu0 %v1480
        %2271 = vmatpush.bf16.msra.mxu0 %v1474
        %2272 = vmatpush.bf16.msra.mxu0 %v1468
        %2273 = vmatpush.bf16.msra.mxu0 %v1462
        %2274 = vmatpush.bf16.msra.mxu0 %v1456
        %2275 = vmatpush.bf16.msra.mxu0 %v1450
        %2276 = vmatpush.bf16.msra.mxu0 %v1444
        %2277 = vmatmul.bf16.gmra.mxu0 %v269
        %v2278 = vpop.f32.mrf.mxu0
        %v2279 = vadd.f32 %v568, %v2278
        %v2280 = vpop.f32.mrf.mxu0
        %v2281 = vadd.f32 %v568, %v2280
        %2282 = vdwg.mxu0
        %2283 = vmatpush.bf16.msra.mxu0 %v1534
        %2284 = vmatpush.bf16.msra.mxu0 %v1528
        %2285 = vmatpush.bf16.msra.mxu0 %v1522
        %2286 = vmatpush.bf16.msra.mxu0 %v1516
        %2287 = vmatpush.bf16.msra.mxu0 %v1510
        %2288 = vmatpush.bf16.msra.mxu0 %v1504
        %2289 = vmatpush.bf16.msra.mxu0 %v1498
        %2290 = vmatpush.bf16.msra.mxu0 %v1492
        %2291 = vmatmul.bf16.gmra.mxu0 %v270
        %v2292 = vpop.f32.mrf.mxu0
        %v2293 = vadd.f32 %v2279, %v2292
        %v2294 = vpop.f32.mrf.mxu0
        %v2295 = vadd.f32 %v2281, %v2294
        %2296 = vdwg.mxu0
        %2297 = vmatpush.bf16.msra.mxu0 %v1582
        %2298 = vmatpush.bf16.msra.mxu0 %v1576
        %2299 = vmatpush.bf16.msra.mxu0 %v1570
        %2300 = vmatpush.bf16.msra.mxu0 %v1564
        %2301 = vmatpush.bf16.msra.mxu0 %v1558
        %2302 = vmatpush.bf16.msra.mxu0 %v1552
        %2303 = vmatpush.bf16.msra.mxu0 %v1546
        %2304 = vmatpush.bf16.msra.mxu0 %v1540
        %2305 = vmatmul.bf16.gmra.mxu0 %v271
        %v2306 = vpop.f32.mrf.mxu0
        %v2307 = vadd.f32 %v2293, %v2306
        %v2308 = vpop.f32.mrf.mxu0
        %v2309 = vadd.f32 %v2295, %v2308
        %2310 = vdwg.mxu0
        %2311 = vmatpush.bf16.msra.mxu0 %v1630
        %2312 = vmatpush.bf16.msra.mxu0 %v1624
        %2313 = vmatpush.bf16.msra.mxu0 %v1618
        %2314 = vmatpush.bf16.msra.mxu0 %v1612
        %2315 = vmatpush.bf16.msra.mxu0 %v1606
        %2316 = vmatpush.bf16.msra.mxu0 %v1600
        %2317 = vmatpush.bf16.msra.mxu0 %v1594
        %2318 = vmatpush.bf16.msra.mxu0 %v1588
        %2319 = vmatmul.bf16.gmra.mxu0 %v272
        %v2320 = vpop.f32.mrf.mxu0
        %v2321 = vadd.f32 %v2307, %v2320
        %v2322 = vpop.f32.mrf.mxu0
        %v2323 = vadd.f32 %v2309, %v2322
        %2324 = vdwg.mxu0
        %2325 = vmatpush.bf16.msra.mxu0 %v1678
        %2326 = vmatpush.bf16.msra.mxu0 %v1672
        %2327 = vmatpush.bf16.msra.mxu0 %v1666
        %2328 = vmatpush.bf16.msra.mxu0 %v1660
        %2329 = vmatpush.bf16.msra.mxu0 %v1654
        %2330 = vmatpush.bf16.msra.mxu0 %v1648
        %2331 = vmatpush.bf16.msra.mxu0 %v1642
        %2332 = vmatpush.bf16.msra.mxu0 %v1636
        %2333 = vmatmul.bf16.gmra.mxu0 %v273
        %v2334 = vpop.f32.mrf.mxu0
        %v2335 = vadd.f32 %v2321, %v2334
        %v2336 = vpop.f32.mrf.mxu0
        %v2337 = vadd.f32 %v2323, %v2336
        %2338 = vdwg.mxu0
        %2339 = vmatpush.bf16.msra.mxu0 %v1726
        %2340 = vmatpush.bf16.msra.mxu0 %v1720
        %2341 = vmatpush.bf16.msra.mxu0 %v1714
        %2342 = vmatpush.bf16.msra.mxu0 %v1708
        %2343 = vmatpush.bf16.msra.mxu0 %v1702
        %2344 = vmatpush.bf16.msra.mxu0 %v1696
        %2345 = vmatpush.bf16.msra.mxu0 %v1690
        %2346 = vmatpush.bf16.msra.mxu0 %v1684
        %2347 = vmatmul.bf16.gmra.mxu0 %v274
        %v2348 = vpop.f32.mrf.mxu0
        %v2349 = vadd.f32 %v2335, %v2348
        %v2350 = vpop.f32.mrf.mxu0
        %v2351 = vadd.f32 %v2337, %v2350
        %2352 = vdwg.mxu0
        %2353 = vmatpush.bf16.msra.mxu0 %v1487
        %2354 = vmatpush.bf16.msra.mxu0 %v1481
        %2355 = vmatpush.bf16.msra.mxu0 %v1475
        %2356 = vmatpush.bf16.msra.mxu0 %v1469
        %2357 = vmatpush.bf16.msra.mxu0 %v1463
        %2358 = vmatpush.bf16.msra.mxu0 %v1457
        %2359 = vmatpush.bf16.msra.mxu0 %v1451
        %2360 = vmatpush.bf16.msra.mxu0 %v1445
        %2361 = vmatmul.bf16.gmra.mxu0 %v269
        %v2362 = vpop.f32.mrf.mxu0
        %v2363 = vadd.f32 %v569, %v2362
        %v2364 = vpop.f32.mrf.mxu0
        %v2365 = vadd.f32 %v569, %v2364
        %2366 = vdwg.mxu0
        %2367 = vmatpush.bf16.msra.mxu0 %v1535
        %2368 = vmatpush.bf16.msra.mxu0 %v1529
        %2369 = vmatpush.bf16.msra.mxu0 %v1523
        %2370 = vmatpush.bf16.msra.mxu0 %v1517
        %2371 = vmatpush.bf16.msra.mxu0 %v1511
        %2372 = vmatpush.bf16.msra.mxu0 %v1505
        %2373 = vmatpush.bf16.msra.mxu0 %v1499
        %2374 = vmatpush.bf16.msra.mxu0 %v1493
        %2375 = vmatmul.bf16.gmra.mxu0 %v270
        %v2376 = vpop.f32.mrf.mxu0
        %v2377 = vadd.f32 %v2363, %v2376
        %v2378 = vpop.f32.mrf.mxu0
        %v2379 = vadd.f32 %v2365, %v2378
        %2380 = vdwg.mxu0
        %2381 = vmatpush.bf16.msra.mxu0 %v1583
        %2382 = vmatpush.bf16.msra.mxu0 %v1577
        %2383 = vmatpush.bf16.msra.mxu0 %v1571
        %2384 = vmatpush.bf16.msra.mxu0 %v1565
        %2385 = vmatpush.bf16.msra.mxu0 %v1559
        %2386 = vmatpush.bf16.msra.mxu0 %v1553
        %2387 = vmatpush.bf16.msra.mxu0 %v1547
        %2388 = vmatpush.bf16.msra.mxu0 %v1541
        %2389 = vmatmul.bf16.gmra.mxu0 %v271
        %v2390 = vpop.f32.mrf.mxu0
        %v2391 = vadd.f32 %v2377, %v2390
        %v2392 = vpop.f32.mrf.mxu0
        %v2393 = vadd.f32 %v2379, %v2392
        %2394 = vdwg.mxu0
        %2395 = vmatpush.bf16.msra.mxu0 %v1631
        %2396 = vmatpush.bf16.msra.mxu0 %v1625
        %2397 = vmatpush.bf16.msra.mxu0 %v1619
        %2398 = vmatpush.bf16.msra.mxu0 %v1613
        %2399 = vmatpush.bf16.msra.mxu0 %v1607
        %2400 = vmatpush.bf16.msra.mxu0 %v1601
        %2401 = vmatpush.bf16.msra.mxu0 %v1595
        %2402 = vmatpush.bf16.msra.mxu0 %v1589
        %2403 = vmatmul.bf16.gmra.mxu0 %v272
        %v2404 = vpop.f32.mrf.mxu0
        %v2405 = vadd.f32 %v2391, %v2404
        %v2406 = vpop.f32.mrf.mxu0
        %v2407 = vadd.f32 %v2393, %v2406
        %2408 = vdwg.mxu0
        %2409 = vmatpush.bf16.msra.mxu0 %v1679
        %2410 = vmatpush.bf16.msra.mxu0 %v1673
        %2411 = vmatpush.bf16.msra.mxu0 %v1667
        %2412 = vmatpush.bf16.msra.mxu0 %v1661
        %2413 = vmatpush.bf16.msra.mxu0 %v1655
        %2414 = vmatpush.bf16.msra.mxu0 %v1649
        %2415 = vmatpush.bf16.msra.mxu0 %v1643
        %2416 = vmatpush.bf16.msra.mxu0 %v1637
        %2417 = vmatmul.bf16.gmra.mxu0 %v273
        %v2418 = vpop.f32.mrf.mxu0
        %v2419 = vadd.f32 %v2405, %v2418
        %v2420 = vpop.f32.mrf.mxu0
        %v2421 = vadd.f32 %v2407, %v2420
        %2422 = vdwg.mxu0
        %2423 = vmatpush.bf16.msra.mxu0 %v1727
        %2424 = vmatpush.bf16.msra.mxu0 %v1721
        %2425 = vmatpush.bf16.msra.mxu0 %v1715
        %2426 = vmatpush.bf16.msra.mxu0 %v1709
        %2427 = vmatpush.bf16.msra.mxu0 %v1703
        %2428 = vmatpush.bf16.msra.mxu0 %v1697
        %2429 = vmatpush.bf16.msra.mxu0 %v1691
        %2430 = vmatpush.bf16.msra.mxu0 %v1685
        %2431 = vmatmul.bf16.gmra.mxu0 %v274
        %v2432 = vpop.f32.mrf.mxu0
        %v2433 = vadd.f32 %v2419, %v2432
        %v2434 = vpop.f32.mrf.mxu0
        %v2435 = vadd.f32 %v2421, %v2434
        %2436 = vdwg.mxu0
        %2437 = vmatpush.bf16.msra.mxu0 %v1488
        %2438 = vmatpush.bf16.msra.mxu0 %v1482
        %2439 = vmatpush.bf16.msra.mxu0 %v1476
        %2440 = vmatpush.bf16.msra.mxu0 %v1470
        %2441 = vmatpush.bf16.msra.mxu0 %v1464
        %2442 = vmatpush.bf16.msra.mxu0 %v1458
        %2443 = vmatpush.bf16.msra.mxu0 %v1452
        %2444 = vmatpush.bf16.msra.mxu0 %v1446
        %2445 = vmatmul.bf16.gmra.mxu0 %v269
        %v2446 = vpop.f32.mrf.mxu0
        %v2447 = vadd.f32 %v570, %v2446
        %v2448 = vpop.f32.mrf.mxu0
        %v2449 = vadd.f32 %v570, %v2448
        %2450 = vdwg.mxu0
        %2451 = vmatpush.bf16.msra.mxu0 %v1536
        %2452 = vmatpush.bf16.msra.mxu0 %v1530
        %2453 = vmatpush.bf16.msra.mxu0 %v1524
        %2454 = vmatpush.bf16.msra.mxu0 %v1518
        %2455 = vmatpush.bf16.msra.mxu0 %v1512
        %2456 = vmatpush.bf16.msra.mxu0 %v1506
        %2457 = vmatpush.bf16.msra.mxu0 %v1500
        %2458 = vmatpush.bf16.msra.mxu0 %v1494
        %2459 = vmatmul.bf16.gmra.mxu0 %v270
        %v2460 = vpop.f32.mrf.mxu0
        %v2461 = vadd.f32 %v2447, %v2460
        %v2462 = vpop.f32.mrf.mxu0
        %v2463 = vadd.f32 %v2449, %v2462
        %2464 = vdwg.mxu0
        %2465 = vmatpush.bf16.msra.mxu0 %v1584
        %2466 = vmatpush.bf16.msra.mxu0 %v1578
        %2467 = vmatpush.bf16.msra.mxu0 %v1572
        %2468 = vmatpush.bf16.msra.mxu0 %v1566
        %2469 = vmatpush.bf16.msra.mxu0 %v1560
        %2470 = vmatpush.bf16.msra.mxu0 %v1554
        %2471 = vmatpush.bf16.msra.mxu0 %v1548
        %2472 = vmatpush.bf16.msra.mxu0 %v1542
        %2473 = vmatmul.bf16.gmra.mxu0 %v271
        %v2474 = vpop.f32.mrf.mxu0
        %v2475 = vadd.f32 %v2461, %v2474
        %v2476 = vpop.f32.mrf.mxu0
        %v2477 = vadd.f32 %v2463, %v2476
        %2478 = vdwg.mxu0
        %2479 = vmatpush.bf16.msra.mxu0 %v1632
        %2480 = vmatpush.bf16.msra.mxu0 %v1626
        %2481 = vmatpush.bf16.msra.mxu0 %v1620
        %2482 = vmatpush.bf16.msra.mxu0 %v1614
        %2483 = vmatpush.bf16.msra.mxu0 %v1608
        %2484 = vmatpush.bf16.msra.mxu0 %v1602
        %2485 = vmatpush.bf16.msra.mxu0 %v1596
        %2486 = vmatpush.bf16.msra.mxu0 %v1590
        %2487 = vmatmul.bf16.gmra.mxu0 %v272
        %v2488 = vpop.f32.mrf.mxu0
        %v2489 = vadd.f32 %v2475, %v2488
        %v2490 = vpop.f32.mrf.mxu0
        %v2491 = vadd.f32 %v2477, %v2490
        %2492 = vdwg.mxu0
        %2493 = vmatpush.bf16.msra.mxu0 %v1680
        %2494 = vmatpush.bf16.msra.mxu0 %v1674
        %2495 = vmatpush.bf16.msra.mxu0 %v1668
        %2496 = vmatpush.bf16.msra.mxu0 %v1662
        %2497 = vmatpush.bf16.msra.mxu0 %v1656
        %2498 = vmatpush.bf16.msra.mxu0 %v1650
        %2499 = vmatpush.bf16.msra.mxu0 %v1644
        %2500 = vmatpush.bf16.msra.mxu0 %v1638
        %2501 = vmatmul.bf16.gmra.mxu0 %v273
        %v2502 = vpop.f32.mrf.mxu0
        %v2503 = vadd.f32 %v2489, %v2502
        %v2504 = vpop.f32.mrf.mxu0
        %v2505 = vadd.f32 %v2491, %v2504
        %2506 = vdwg.mxu0
        %2507 = vmatpush.bf16.msra.mxu0 %v1728
        %2508 = vmatpush.bf16.msra.mxu0 %v1722
        %2509 = vmatpush.bf16.msra.mxu0 %v1716
        %2510 = vmatpush.bf16.msra.mxu0 %v1710
        %2511 = vmatpush.bf16.msra.mxu0 %v1704
        %2512 = vmatpush.bf16.msra.mxu0 %v1698
        %2513 = vmatpush.bf16.msra.mxu0 %v1692
        %2514 = vmatpush.bf16.msra.mxu0 %v1686
        %2515 = vmatmul.bf16.gmra.mxu0 %v274
        %v2516 = vpop.f32.mrf.mxu0
        %v2517 = vadd.f32 %v2503, %v2516
        %v2518 = vpop.f32.mrf.mxu0
        %v2519 = vadd.f32 %v2505, %v2518
        %2520 = vdwg.mxu0
        %v2521 = vtanh.pop %v2097
        %v2522 = vtanh.pop %v2181
        %v2523 = vtanh.pop %v2265
        %v2524 = vtanh.pop %v2349
        %v2525 = vtanh.pop %v2433
        %v2526 = vtanh.pop %v2517
        %v2527 = vtanh.pop %v2099
        %v2528 = vtanh.pop %v2183
        %v2529 = vtanh.pop %v2267
        %v2530 = vtanh.pop %v2351
        %v2531 = vtanh.pop %v2435
        %v2532 = vtanh.pop %v2519
        %v2533 = vpack.c.bf16 %v2527, %v2521
        %v2534 = vpack.c.bf16 %v2528, %v2522
        %v2535 = vpack.c.bf16 %v2529, %v2523
        %v2536 = vpack.c.bf16 %v2530, %v2524
        %v2537 = vpack.c.bf16 %v2531, %v2525
        %v2538 = vpack.c.bf16 %v2532, %v2526
        %v2539 = vld [vmem:[%s3] sm:$0xf]
        %v2540 = vld [vmem:[%s3 + $0x4] sm:$0xf]
        %v2541 = vld [vmem:[%s3 + $0x8] sm:$0xf]
        %v2542 = vld [vmem:[%s3 + $0xc] sm:$0xf]
        %v2543 = vld [vmem:[%s3 + $0x10] sm:$0xf]
        %v2544 = vld [vmem:[%s3 + $0x14] sm:$0xf]
        %v2545 = vld [vmem:[%s3 + $0x18] sm:$0xf]
        %v2546 = vld [vmem:[%s3 + $0x1c] sm:$0xf]
        %v2547 = vld [vmem:[%s3 + $0x20] sm:$0xf]
        %v2548 = vld [vmem:[%s3 + $0x24] sm:$0xf]
        %v2549 = vld [vmem:[%s3 + $0x28] sm:$0xf]
        %v2550 = vld [vmem:[%s3 + $0x2c] sm:$0xf]
        %v2551 = vld [vmem:[%s3 + $0x30] sm:$0xf]
        %v2552 = vld [vmem:[%s3 + $0x34] sm:$0xf]
        %v2553 = vld [vmem:[%s3 + $0x38] sm:$0xf]
        %v2554 = vld [vmem:[%s3 + $0x3c] sm:$0xf]
        %v2555 = vld [vmem:[%s3 + $0x40] sm:$0xf]
        %v2556 = vld [vmem:[%s3 + $0x44] sm:$0xf]
        %v2557 = vld [vmem:[%s3 + $0x48] sm:$0xf]
        %v2558 = vld [vmem:[%s3 + $0x4c] sm:$0xf]
        %v2559 = vld [vmem:[%s3 + $0x50] sm:$0xf]
        %v2560 = vld [vmem:[%s3 + $0x54] sm:$0xf]
        %v2561 = vld [vmem:[%s3 + $0x58] sm:$0xf]
        %v2562 = vld [vmem:[%s3 + $0x5c] sm:$0xf]
        %v2563 = vld [vmem:[%s3 + $0x60] sm:$0xf]
        %v2564 = vld [vmem:[%s3 + $0x64] sm:$0xf]
        %v2565 = vld [vmem:[%s3 + $0x68] sm:$0xf]
        %v2566 = vld [vmem:[%s3 + $0x6c] sm:$0xf]
        %v2567 = vld [vmem:[%s3 + $0x70] sm:$0xf]
        %v2568 = vld [vmem:[%s3 + $0x74] sm:$0xf]
        %v2569 = vld [vmem:[%s3 + $0x78] sm:$0xf]
        %v2570 = vld [vmem:[%s3 + $0x7c] sm:$0xf]
        %v2571 = vld [vmem:[%s3 + $0x80] sm:$0xf]
        %v2572 = vld [vmem:[%s3 + $0x84] sm:$0xf]
        %v2573 = vld [vmem:[%s3 + $0x88] sm:$0xf]
        %v2574 = vld [vmem:[%s3 + $0x8c] sm:$0xf]
        %v2575 = vld [vmem:[%s3 + $0x90] sm:$0xf]
        %v2576 = vld [vmem:[%s3 + $0x94] sm:$0xf]
        %v2577 = vld [vmem:[%s3 + $0x98] sm:$0xf]
        %v2578 = vld [vmem:[%s3 + $0x9c] sm:$0xf]
        %v2579 = vld [vmem:[%s3 + $0xa0] sm:$0xf]
        %v2580 = vld [vmem:[%s3 + $0xa4] sm:$0xf]
        %v2581 = vld [vmem:[%s3 + $0xa8] sm:$0xf]
        %v2582 = vld [vmem:[%s3 + $0xac] sm:$0xf]
        %v2583 = vld [vmem:[%s3 + $0xb0] sm:$0xf]
        %v2584 = vld [vmem:[%s3 + $0xb4] sm:$0xf]
        %v2585 = vld [vmem:[%s3 + $0xb8] sm:$0xf]
        %v2586 = vld [vmem:[%s3 + $0xbc] sm:$0xf]
        %v2587 = vld [vmem:[%s3 + $0xc0] sm:$0xf]
        %v2588 = vld [vmem:[%s3 + $0xc4] sm:$0xf]
        %v2589 = vld [vmem:[%s3 + $0xc8] sm:$0xf]
        %v2590 = vld [vmem:[%s3 + $0xcc] sm:$0xf]
        %v2591 = vld [vmem:[%s3 + $0xd0] sm:$0xf]
        %v2592 = vld [vmem:[%s3 + $0xd4] sm:$0xf]
        %v2593 = vld [vmem:[%s3 + $0xd8] sm:$0xf]
        %v2594 = vld [vmem:[%s3 + $0xdc] sm:$0xf]
        %v2595 = vld [vmem:[%s3 + $0xe0] sm:$0xf]
        %v2596 = vld [vmem:[%s3 + $0xe4] sm:$0xf]
        %v2597 = vld [vmem:[%s3 + $0xe8] sm:$0xf]
        %v2598 = vld [vmem:[%s3 + $0xec] sm:$0xf]
        %v2599 = vld [vmem:[%s3 + $0xf0] sm:$0xf]
        %v2600 = vld [vmem:[%s3 + $0xf4] sm:$0xf]
        %v2601 = vld [vmem:[%s3 + $0xf8] sm:$0xf]
        %v2602 = vld [vmem:[%s3 + $0xfc] sm:$0xf]
        %v2603 = vld [vmem:[%s3 + $0x100] sm:$0xf]
        %v2604 = vld [vmem:[%s3 + $0x104] sm:$0xf]
        %v2605 = vld [vmem:[%s3 + $0x108] sm:$0xf]
        %v2606 = vld [vmem:[%s3 + $0x10c] sm:$0xf]
        %v2607 = vld [vmem:[%s3 + $0x110] sm:$0xf]
        %v2608 = vld [vmem:[%s3 + $0x114] sm:$0xf]
        %v2609 = vld [vmem:[%s3 + $0x118] sm:$0xf]
        %v2610 = vld [vmem:[%s3 + $0x11c] sm:$0xf]
        %v2611 = vld [vmem:[%s3 + $0x120] sm:$0xf]
        %v2612 = vld [vmem:[%s3 + $0x124] sm:$0xf]
        %v2613 = vld [vmem:[%s3 + $0x128] sm:$0xf]
        %v2614 = vld [vmem:[%s3 + $0x12c] sm:$0xf]
        %v2615 = vld [vmem:[%s3 + $0x130] sm:$0xf]
        %v2616 = vld [vmem:[%s3 + $0x134] sm:$0xf]
        %v2617 = vld [vmem:[%s3 + $0x138] sm:$0xf]
        %v2618 = vld [vmem:[%s3 + $0x13c] sm:$0xf]
        %v2619 = vld [vmem:[%s3 + $0x140] sm:$0xf]
        %v2620 = vld [vmem:[%s3 + $0x144] sm:$0xf]
        %v2621 = vld [vmem:[%s3 + $0x148] sm:$0xf]
        %v2622 = vld [vmem:[%s3 + $0x14c] sm:$0xf]
        %v2623 = vld [vmem:[%s3 + $0x150] sm:$0xf]
        %v2624 = vld [vmem:[%s3 + $0x154] sm:$0xf]
        %v2625 = vld [vmem:[%s3 + $0x158] sm:$0xf]
        %v2626 = vld [vmem:[%s3 + $0x15c] sm:$0xf]
        %v2627 = vld [vmem:[%s3 + $0x160] sm:$0xf]
        %v2628 = vld [vmem:[%s3 + $0x164] sm:$0xf]
        %v2629 = vld [vmem:[%s3 + $0x168] sm:$0xf]
        %v2630 = vld [vmem:[%s3 + $0x16c] sm:$0xf]
        %v2631 = vld [vmem:[%s3 + $0x170] sm:$0xf]
        %v2632 = vld [vmem:[%s3 + $0x174] sm:$0xf]
        %v2633 = vld [vmem:[%s3 + $0x178] sm:$0xf]
        %v2634 = vld [vmem:[%s3 + $0x17c] sm:$0xf]
        %v2731 = vunpack.c.l.b16 %v2539
        %v2732 = vunpack.c.l.b16 %v2540
        %v2733 = vunpack.c.l.b16 %v2541
        %v2734 = vunpack.c.l.b16 %v2542
        %v2735 = vunpack.c.l.b16 %v2543
        %v2736 = vunpack.c.l.b16 %v2544
        %v2737 = vunpack.c.l.b16 %v2545
        %v2738 = vunpack.c.l.b16 %v2546
        %v2739 = vunpack.c.l.b16 %v2547
        %v2740 = vunpack.c.l.b16 %v2548
        %v2741 = vunpack.c.l.b16 %v2549
        %v2742 = vunpack.c.l.b16 %v2550
        %v2743 = vunpack.c.l.b16 %v2551
        %v2744 = vunpack.c.l.b16 %v2552
        %v2745 = vunpack.c.l.b16 %v2553
        %v2746 = vunpack.c.l.b16 %v2554
        %v2747 = vunpack.c.l.b16 %v2555
        %v2748 = vunpack.c.l.b16 %v2556
        %v2749 = vunpack.c.l.b16 %v2557
        %v2750 = vunpack.c.l.b16 %v2558
        %v2751 = vunpack.c.l.b16 %v2559
        %v2752 = vunpack.c.l.b16 %v2560
        %v2753 = vunpack.c.l.b16 %v2561
        %v2754 = vunpack.c.l.b16 %v2562
        %v2755 = vunpack.c.l.b16 %v2563
        %v2756 = vunpack.c.l.b16 %v2564
        %v2757 = vunpack.c.l.b16 %v2565
        %v2758 = vunpack.c.l.b16 %v2566
        %v2759 = vunpack.c.l.b16 %v2567
        %v2760 = vunpack.c.l.b16 %v2568
        %v2761 = vunpack.c.l.b16 %v2569
        %v2762 = vunpack.c.l.b16 %v2570
        %v2763 = vunpack.c.l.b16 %v2571
        %v2764 = vunpack.c.l.b16 %v2572
        %v2765 = vunpack.c.l.b16 %v2573
        %v2766 = vunpack.c.l.b16 %v2574
        %v2767 = vunpack.c.l.b16 %v2575
        %v2768 = vunpack.c.l.b16 %v2576
        %v2769 = vunpack.c.l.b16 %v2577
        %v2770 = vunpack.c.l.b16 %v2578
        %v2771 = vunpack.c.l.b16 %v2579
        %v2772 = vunpack.c.l.b16 %v2580
        %v2773 = vunpack.c.l.b16 %v2581
        %v2774 = vunpack.c.l.b16 %v2582
        %v2775 = vunpack.c.l.b16 %v2583
        %v2776 = vunpack.c.l.b16 %v2584
        %v2777 = vunpack.c.l.b16 %v2585
        %v2778 = vunpack.c.l.b16 %v2586
        %v2779 = vunpack.c.l.b16 %v2587
        %v2780 = vunpack.c.l.b16 %v2588
        %v2781 = vunpack.c.l.b16 %v2589
        %v2782 = vunpack.c.l.b16 %v2590
        %v2783 = vunpack.c.l.b16 %v2591
        %v2784 = vunpack.c.l.b16 %v2592
        %v2785 = vunpack.c.l.b16 %v2593
        %v2786 = vunpack.c.l.b16 %v2594
        %v2787 = vunpack.c.l.b16 %v2595
        %v2788 = vunpack.c.l.b16 %v2596
        %v2789 = vunpack.c.l.b16 %v2597
        %v2790 = vunpack.c.l.b16 %v2598
        %v2791 = vunpack.c.l.b16 %v2599
        %v2792 = vunpack.c.l.b16 %v2600
        %v2793 = vunpack.c.l.b16 %v2601
        %v2794 = vunpack.c.l.b16 %v2602
        %v2795 = vunpack.c.l.b16 %v2603
        %v2796 = vunpack.c.l.b16 %v2604
        %v2797 = vunpack.c.l.b16 %v2605
        %v2798 = vunpack.c.l.b16 %v2606
        %v2799 = vunpack.c.l.b16 %v2607
        %v2800 = vunpack.c.l.b16 %v2608
        %v2801 = vunpack.c.l.b16 %v2609
        %v2802 = vunpack.c.l.b16 %v2610
        %v2803 = vunpack.c.l.b16 %v2611
        %v2804 = vunpack.c.l.b16 %v2612
        %v2805 = vunpack.c.l.b16 %v2613
        %v2806 = vunpack.c.l.b16 %v2614
        %v2807 = vunpack.c.l.b16 %v2615
        %v2808 = vunpack.c.l.b16 %v2616
        %v2809 = vunpack.c.l.b16 %v2617
        %v2810 = vunpack.c.l.b16 %v2618
        %v2811 = vunpack.c.l.b16 %v2619
        %v2812 = vunpack.c.l.b16 %v2620
        %v2813 = vunpack.c.l.b16 %v2621
        %v2814 = vunpack.c.l.b16 %v2622
        %v2815 = vunpack.c.l.b16 %v2623
        %v2816 = vunpack.c.l.b16 %v2624
        %v2817 = vunpack.c.l.b16 %v2625
        %v2818 = vunpack.c.l.b16 %v2626
        %v2819 = vunpack.c.l.b16 %v2627
        %v2820 = vunpack.c.l.b16 %v2628
        %v2821 = vunpack.c.l.b16 %v2629
        %v2822 = vunpack.c.l.b16 %v2630
        %v2823 = vunpack.c.l.b16 %v2631
        %v2824 = vunpack.c.l.b16 %v2632
        %v2825 = vunpack.c.l.b16 %v2633
        %v2826 = vunpack.c.l.b16 %v2634
        %v2827 = vpack.c.b16 %v2732, %v2731
        %v2828 = vpack.c.b16 %v2734, %v2733
        %v2829 = vpack.c.b16 %v2736, %v2735
        %v2830 = vpack.c.b16 %v2738, %v2737
        %v2831 = vpack.c.b16 %v2740, %v2739
        %v2832 = vpack.c.b16 %v2742, %v2741
        %v2833 = vpack.c.b16 %v2744, %v2743
        %v2834 = vpack.c.b16 %v2746, %v2745
        %v2835 = vpack.c.b16 %v2748, %v2747
        %v2836 = vpack.c.b16 %v2750, %v2749
        %v2837 = vpack.c.b16 %v2752, %v2751
        %v2838 = vpack.c.b16 %v2754, %v2753
        %v2839 = vpack.c.b16 %v2756, %v2755
        %v2840 = vpack.c.b16 %v2758, %v2757
        %v2841 = vpack.c.b16 %v2760, %v2759
        %v2842 = vpack.c.b16 %v2762, %v2761
        %v2843 = vpack.c.b16 %v2764, %v2763
        %v2844 = vpack.c.b16 %v2766, %v2765
        %v2845 = vpack.c.b16 %v2768, %v2767
        %v2846 = vpack.c.b16 %v2770, %v2769
        %v2847 = vpack.c.b16 %v2772, %v2771
        %v2848 = vpack.c.b16 %v2774, %v2773
        %v2849 = vpack.c.b16 %v2776, %v2775
        %v2850 = vpack.c.b16 %v2778, %v2777
        %v2851 = vpack.c.b16 %v2780, %v2779
        %v2852 = vpack.c.b16 %v2782, %v2781
        %v2853 = vpack.c.b16 %v2784, %v2783
        %v2854 = vpack.c.b16 %v2786, %v2785
        %v2855 = vpack.c.b16 %v2788, %v2787
        %v2856 = vpack.c.b16 %v2790, %v2789
        %v2857 = vpack.c.b16 %v2792, %v2791
        %v2858 = vpack.c.b16 %v2794, %v2793
        %v2859 = vpack.c.b16 %v2796, %v2795
        %v2860 = vpack.c.b16 %v2798, %v2797
        %v2861 = vpack.c.b16 %v2800, %v2799
        %v2862 = vpack.c.b16 %v2802, %v2801
        %v2863 = vpack.c.b16 %v2804, %v2803
        %v2864 = vpack.c.b16 %v2806, %v2805
        %v2865 = vpack.c.b16 %v2808, %v2807
        %v2866 = vpack.c.b16 %v2810, %v2809
        %v2867 = vpack.c.b16 %v2812, %v2811
        %v2868 = vpack.c.b16 %v2814, %v2813
        %v2869 = vpack.c.b16 %v2816, %v2815
        %v2870 = vpack.c.b16 %v2818, %v2817
        %v2871 = vpack.c.b16 %v2820, %v2819
        %v2872 = vpack.c.b16 %v2822, %v2821
        %v2873 = vpack.c.b16 %v2824, %v2823
        %v2874 = vpack.c.b16 %v2826, %v2825
        %2923 = vmatpush.bf16.msra.mxu0 %v2834
        %2924 = vmatpush.bf16.msra.mxu0 %v2833
        %2925 = vmatpush.bf16.msra.mxu0 %v2832
        %2926 = vmatpush.bf16.msra.mxu0 %v2831
        %2927 = vmatpush.bf16.msra.mxu0 %v2830
        %2928 = vmatpush.bf16.msra.mxu0 %v2829
        %2929 = vmatpush.bf16.msra.mxu0 %v2828
        %2930 = vmatpush.bf16.msra.mxu0 %v2827
        %2931 = vmatmul.bf16.gmra.mxu0 %v2533
        %v2932 = vpop.f32.mrf.mxu0
        %v2933 = vadd.f32 0.0, %v2932
        %v2934 = vpop.f32.mrf.mxu0
        %v2935 = vadd.f32 0.0, %v2934
        %2936 = vdwg.mxu0
        %2937 = vmatpush.bf16.msra.mxu0 %v2842
        %2938 = vmatpush.bf16.msra.mxu0 %v2841
        %2939 = vmatpush.bf16.msra.mxu0 %v2840
        %2940 = vmatpush.bf16.msra.mxu0 %v2839
        %2941 = vmatpush.bf16.msra.mxu0 %v2838
        %2942 = vmatpush.bf16.msra.mxu0 %v2837
        %2943 = vmatpush.bf16.msra.mxu0 %v2836
        %2944 = vmatpush.bf16.msra.mxu0 %v2835
        %2945 = vmatmul.bf16.gmra.mxu0 %v2534
        %v2946 = vpop.f32.mrf.mxu0
        %v2947 = vadd.f32 %v2933, %v2946
        %v2948 = vpop.f32.mrf.mxu0
        %v2949 = vadd.f32 %v2935, %v2948
        %2950 = vdwg.mxu0
        %2951 = vmatpush.bf16.msra.mxu0 %v2850
        %2952 = vmatpush.bf16.msra.mxu0 %v2849
        %2953 = vmatpush.bf16.msra.mxu0 %v2848
        %2954 = vmatpush.bf16.msra.mxu0 %v2847
        %2955 = vmatpush.bf16.msra.mxu0 %v2846
        %2956 = vmatpush.bf16.msra.mxu0 %v2845
        %2957 = vmatpush.bf16.msra.mxu0 %v2844
        %2958 = vmatpush.bf16.msra.mxu0 %v2843
        %2959 = vmatmul.bf16.gmra.mxu0 %v2535
        %v2960 = vpop.f32.mrf.mxu0
        %v2961 = vadd.f32 %v2947, %v2960
        %v2962 = vpop.f32.mrf.mxu0
        %v2963 = vadd.f32 %v2949, %v2962
        %2964 = vdwg.mxu0
        %2965 = vmatpush.bf16.msra.mxu0 %v2858
        %2966 = vmatpush.bf16.msra.mxu0 %v2857
        %2967 = vmatpush.bf16.msra.mxu0 %v2856
        %2968 = vmatpush.bf16.msra.mxu0 %v2855
        %2969 = vmatpush.bf16.msra.mxu0 %v2854
        %2970 = vmatpush.bf16.msra.mxu0 %v2853
        %2971 = vmatpush.bf16.msra.mxu0 %v2852
        %2972 = vmatpush.bf16.msra.mxu0 %v2851
        %2973 = vmatmul.bf16.gmra.mxu0 %v2536
        %v2974 = vpop.f32.mrf.mxu0
        %v2975 = vadd.f32 %v2961, %v2974
        %v2976 = vpop.f32.mrf.mxu0
        %v2977 = vadd.f32 %v2963, %v2976
        %2978 = vdwg.mxu0
        %2979 = vmatpush.bf16.msra.mxu0 %v2866
        %2980 = vmatpush.bf16.msra.mxu0 %v2865
        %2981 = vmatpush.bf16.msra.mxu0 %v2864
        %2982 = vmatpush.bf16.msra.mxu0 %v2863
        %2983 = vmatpush.bf16.msra.mxu0 %v2862
        %2984 = vmatpush.bf16.msra.mxu0 %v2861
        %2985 = vmatpush.bf16.msra.mxu0 %v2860
        %2986 = vmatpush.bf16.msra.mxu0 %v2859
        %2987 = vmatmul.bf16.gmra.mxu0 %v2537
        %v2988 = vpop.f32.mrf.mxu0
        %v2989 = vadd.f32 %v2975, %v2988
        %v2990 = vpop.f32.mrf.mxu0
        %v2991 = vadd.f32 %v2977, %v2990
        %2992 = vdwg.mxu0
        %2993 = vmatpush.bf16.msra.mxu0 %v2874
        %2994 = vmatpush.bf16.msra.mxu0 %v2873
        %2995 = vmatpush.bf16.msra.mxu0 %v2872
        %2996 = vmatpush.bf16.msra.mxu0 %v2871
        %2997 = vmatpush.bf16.msra.mxu0 %v2870
        %2998 = vmatpush.bf16.msra.mxu0 %v2869
        %2999 = vmatpush.bf16.msra.mxu0 %v2868
        %3000 = vmatpush.bf16.msra.mxu0 %v2867
        %3001 = vmatmul.bf16.gmra.mxu0 %v2538
        %v3002 = vpop.f32.mrf.mxu0
        %v3003 = vadd.f32 %v2989, %v3002
        %v3004 = vpop.f32.mrf.mxu0
        %v3005 = vadd.f32 %v2991, %v3004
        %3006 = vdwg.mxu0
        %v3007 = vlaneseq
        %v3008 = vshrl.u32 %v3007, 7
        %v3009 = vadd.s32 %v3008, 8
        %v3010 = vlaneseq
        %v3011 = vand.u32 %v3010, 127
        %vm3012 = vcmp.eq.s32.totalorder %v3008, %v3011
        %vm3013 = vcmp.eq.s32.totalorder %v3009, %v3011
        %3015 = vset.pattern.permute.xlu0 1
        %3016 = vperm.xlu0 %3015, %v3003
        %v3017 = vpop.permute.xlu0 %3016
        %3020 = vset.pattern.permute.xlu0 1
        %3021 = vperm.xlu0 %3020, %v3005
        %v3022 = vpop.permute.xlu0 %3021
        %v3024 = vsel %vm3012, %v3017, 0.0
        %v3025 = vsel %vm3013, %v3022, 0.0
        %vm3026 = vcmask 1040384
        %v3027 = vsel %vm3026, %v3025, 0.0
        %v3028 = vadd.f32 %v3024, %v3027
        %v3029 = vrot.slane %v3028, 4
        %v3030 = vadd.f32 %v3028, %v3029
        %v3031 = vrot.slane %v3030, 2
        %v3032 = vadd.f32 %v3030, %v3031
        %v3033 = vrot.slane %v3032, 1
        %v3034 = vadd.f32 %v3032, %v3033
        %v3035 = vld [vmem:[%s4] sm:$0xff]
        %v3036 = vld [vmem:[%s4 + $0x8] sm:$0x3]
        %vm3037 = vcmp.eq.s32.totalorder %v3011, 9
        %3038 = vset.pattern.permute.xlu0 0
        %3039 = vperm.xlu0 %3038, %v3003
        %v3040 = vpop.permute.xlu0 %3039
        %3042 = vset.pattern.permute.xlu0 0
        %3043 = vperm.xlu0 %3042, %v3005
        %v3044 = vpop.permute.xlu0 %3043
        %v3046 = vsel %vm3037, %v3017, %v3040
        %v3047 = vsel %vm3037, %v3022, %v3044
        %v3048 = vadd.f32 %v3046, %v3034
        %v3049 = vadd.f32 %v3047, %v3034
        %v3050 = vperm.slane %v3036, 1
        %v3051 = vadd.f32 %v3048, %v3050
        %v3052 = vadd.f32 %v3049, %v3050
        %v3053 = vmax.f32 %v3051, 0.0
        %v3054 = vmax.f32 %v3052, 0.0
        %v3055 = vadd.f32 %v3035, %v3053
        %v3056 = vadd.f32 %v3036, %v3054
        %3057 = vst [vmem:[%s256] sm:$0xff] %v3055
        %3058 = vst [vmem:[%s256 + $0x8] sm:$0x1] %v3056
        %p3059 = scmp.lt.s32.totalorder %s18, 1
        %s3060 = scalar_select %p3059, %s18, 1
        %s3061 = smul.addr %s3060, 2
        %s3062 = smul.addr %s3061, 8
        %s3063 = scalar_lea.vmem %s5, %s3062
        // Predicated region
        $region49: #{few_shot_transition_scorer.1} parent=39 // pred_check
          %p3064 = pneg %p146
        $region50: #{few_shot_transition_scorer.1} parent=39 // pred_check_branch
          %3066 = sbr.rel (%p3064) target = $region52
        $region51: #{few_shot_transition_scorer.1} parent=39 // pred_region
          _
        $region52: #{few_shot_transition_scorer.1} parent=39 // pred_fallthru
          _
      $region40: #{few_shot_transition_scorer.1} parent=5 // pred_fallthru
        _
      %p3067 = scmp.le.s32.totalorder 2, %s13
      // Predicated region
      $region53: #{few_shot_transition_scorer.1} parent=5 // pred_check
        %p3068 = pneg %p3067
      $region54: #{few_shot_transition_scorer.1} parent=5 // pred_check_branch
        %3070 = sbr.rel (%p3068) target = $region56
      $region55: #{few_shot_transition_scorer.1} parent=5 // pred_region
        %s3071 = ssub.s32 %s13, 2
        // Predicated region
        $region57: #{few_shot_transition_scorer.1} parent=55 // pred_check
          %p3072 = pneg %p152
        $region58: #{few_shot_transition_scorer.1} parent=55 // pred_check_branch
          %3074 = sbr.rel (%p3072) target = $region60
        $region59: #{few_shot_transition_scorer.1} parent=55 // pred_region
          %p3075 = scmp.lt.s32.totalorder %s19, 1
          %s3076 = scalar_select %p3075, %s19, 1
          %s3077 = smul.addr %s3076, 2
          %s3078 = smul.addr %s3077, 8
          %s3079 = scalar_lea.vmem %s5, %s3078
        $region60: #{few_shot_transition_scorer.1} parent=55 // pred_fallthru
          _
      $region56: #{few_shot_transition_scorer.1} parent=5 // pred_fallthru
        _
    $region6: #{few_shot_transition_scorer.1} parent=1 // loop_footer
      %s17 = sadd.s32 1, %s13
    $region7: #{few_shot_transition_scorer.1} parent=1 // loop_footer_branch
      %12 = sbr.rel target = $region3
    $region8: #{few_shot_transition_scorer.1} parent=1 // loop_exit
      _
    %3080 = vsyncpa [#allocation3], 1
    %s3081 = scalar_lea.sflag [#allocation3], 1
    %3082 = vsyncpa %s3081, 1
    %3083 = vsyncpa [#allocation5], 1

</llo_original>
